<compile_context>
chip_gen: v7x
topology: tpu7x:2x2x1
jax: 0.10.0
libtpu: 0.0.40
codegen_flags: <defaults>
</compile_context>

<pallas_src>
import functools

import jax
import jax.numpy as jnp
from jax.experimental import pallas as pl
from jax.experimental.pallas import tpu as pltpu


# ---------------------------------------------------------------------------
# Pallas kernel 1: conv1 (Cin=1 -> K=9) + bias + ReLU + 2x2 maxpool, pure VPU rank-1 MACs.
#   a_ref: (4, K, tm)  4 = pool-window positions, K = 9*Cin, tm = pooled-pixel lane tile
#   w_ref: (Cout, K), b_ref: (Cout, 1)  ->  o_ref: (Cout, tm)  (lane-dense bf16 output)
# ---------------------------------------------------------------------------
def _conv1_relu_pool_kernel(a_ref, w_ref, b_ref, o_ref):
    w = w_ref[...]                      # (Cout, K) f32, loaded once (hoisted out of pool loop)
    bias = b_ref[...]                   # (Cout, 1), broadcast along lanes
    n_k = w.shape[1]
    pooled = None
    for p in range(a_ref.shape[0]):     # 4 pool-window positions, unrolled
        a_p = a_ref[p]                  # (K, tm) f32
        acc = w[:, 0:1] * a_p[0:1, :]   # start from tap 0: no zeros re-materialization
        for k in range(1, n_k):
            acc = acc + w[:, k:k + 1] * a_p[k:k + 1, :]
        v = jnp.maximum(acc + bias, 0.0)                              # fused bias + ReLU
        pooled = v if pooled is None else jnp.maximum(pooled, v)     # fused 2x2 maxpool
    o_ref[...] = pooled.astype(o_ref.dtype)                          # bf16 writeback


def _pick_lane_tile(m):
    # Bigger lane tiles amortize the ~0.35us/step overhead; keep >= 2 blocks so v7x's
    # two TensorCores both get work on the "parallel" pixel axis.
    for t in (2048, 1024, 512, 256, 128):
        if m % t == 0 and m // t >= 2:
            return t
    return m


def conv1_relu_pool(a, w, b):
    """a: (4, K, M) f32 pool-grouped patches, w: (Cout, K), b: (Cout, 1) -> (Cout, M) bf16."""
    _, k, m = a.shape
    cout = w.shape[0]
    tm = _pick_lane_tile(m)
    return pl.pallas_call(
        _conv1_relu_pool_kernel,
        out_shape=jax.ShapeDtypeStruct((cout, m), jnp.bfloat16),
        grid_spec=pltpu.PrefetchScalarGridSpec(
            num_scalar_prefetch=0,
            grid=(m // tm,),
            in_specs=[
                pl.BlockSpec((4, k, tm), lambda i: (0, 0, i)),
                pl.BlockSpec((cout, k), lambda i: (0, 0)),
                pl.BlockSpec((cout, 1), lambda i: (0, 0)),
            ],
            out_specs=pl.BlockSpec((cout, tm), lambda i: (0, i)),
        ),
        compiler_params=pltpu.CompilerParams(dimension_semantics=("parallel",)),
    )(a, w, b)


# ---------------------------------------------------------------------------
# Pallas kernel 2 (fused): conv2 + bias + ReLU + 2x2 maxpool  +  LSTM  +  FC head.
#   a2_ref:  (4*n_pix*N, 9*C1) bf16  pool-grouped conv2 patches, rows = (pool_pos, pix, frame)
#   w2_ref:  (9*C1, C2) bf16, b2_ref: (1, C2) f32
#   wih_ref: (F, 4H) bf16  rows = (y, x, c) feature order, cols = gates (i, f, o, g)
#   whh_ref: (H, 4H) bf16, bl_ref: (1, 4H) f32 (= b_ih + b_hh, gate-permuted)
#   wfc_ref: (H, NC) f32, bfc_ref: (1, NC) f32     -> o_ref: (B, NC) logits
#   scratch: x_scr (N, F) f32, gxp_scr (T*8, 4H) f32
# ---------------------------------------------------------------------------
def _conv2_lstm_fc_kernel(a2_ref, w2_ref, b2_ref, wih_ref, whh_ref, bl_ref,
                          wfc_ref, bfc_ref, o_ref, x_scr, gxp_scr,
                          *, seq_len, batch, hidden, n_pix, n_frames):
    c2 = w2_ref.shape[1]

    # conv2: ONE MXU matmul over all 4 pool-candidate positions (4x wider, amortized push).
    acc = jnp.dot(a2_ref[...], w2_ref[...], preferred_element_type=jnp.float32)   # (4*m, C2)
    v = jnp.maximum(acc + b2_ref[...], 0.0)                                       # bias + ReLU
    m = n_pix * n_frames
    pooled = jnp.maximum(jnp.maximum(v[0:m], v[m:2 * m]),
                         jnp.maximum(v[2 * m:3 * m], v[3 * m:4 * m]))              # (m, C2)

    # Re-layout (pix, frame, C2) -> (frame, features=(pix, c)) with aligned block copies.
    for p in range(n_pix):
        x_scr[:, p * c2:(p + 1) * c2] = pooled[p * n_frames:(p + 1) * n_frames, :]

    # Hoisted time-parallel input projection: one (N, F) @ (F, 4H) MXU matmul for all steps.
    gx = jnp.dot(x_scr[...].astype(jnp.bfloat16), wih_ref[...],
                 preferred_element_type=jnp.float32) + bl_ref[...]                 # (N, 4H)

    # Stage per-step gate slabs sublane-padded to 8 rows so the recurrence only touches
    # tile-aligned slices (padding rows are garbage but never mix into real rows).
    gxp_scr[...] = jnp.zeros_like(gxp_scr)
    for t in range(seq_len):
        gxp_scr[t * 8:t * 8 + batch, :] = gx[t * batch:(t + 1) * batch, :]

    whh = whh_ref[...]
    h = jnp.zeros((8, hidden), jnp.float32)
    h_bf = jnp.zeros((8, hidden), jnp.bfloat16)
    c = jnp.zeros((8, hidden), jnp.float32)
    # Unrolled recurrence (T is small here).
    # TODO(synk): for long T switch to lax.fori_loop with scratch-backed state to bound
    #             vreg live ranges.
    for t in range(seq_len):
        gates = gxp_scr[t * 8:(t + 1) * 8, :] + jnp.dot(
            h_bf, whh, preferred_element_type=jnp.float32)                         # (8, 4H)
        sg = jax.nn.sigmoid(gates[:, :3 * hidden])          # i, f, o in a single EUP pass
        g = jnp.tanh(gates[:, 3 * hidden:])
        c = sg[:, hidden:2 * hidden] * c + sg[:, :hidden] * g
        h = sg[:, 2 * hidden:3 * hidden] * jnp.tanh(c)
        h_bf = h.astype(jnp.bfloat16)

    # Fused classifier head (logits; softmax is applied outside forward(), as in predict_proba).
    logits = jnp.dot(h[:batch, :], wfc_ref[...],
                     preferred_element_type=jnp.float32) + bfc_ref[...]
    o_ref[...] = logits.astype(o_ref.dtype)


def conv2_lstm_fc(a2, w2, b2, wih, whh, bl, wfc, bfc, *, seq_len, batch, hidden, n_pix):
    assert batch <= 8, "LSTM batch is padded to one 8-row sublane tile"
    rows, k2 = a2.shape
    c2 = w2.shape[1]
    n_frames = seq_len * batch
    nc = wfc.shape[1]
    kern = functools.partial(_conv2_lstm_fc_kernel, seq_len=seq_len, batch=batch,
                             hidden=hidden, n_pix=n_pix, n_frames=n_frames)
    return pl.pallas_call(
        kern,
        out_shape=jax.ShapeDtypeStruct((batch, nc), jnp.float32),
        grid_spec=pltpu.PrefetchScalarGridSpec(
            num_scalar_prefetch=0,
            grid=(1,),
            in_specs=[
                pl.BlockSpec((rows, k2), lambda i: (0, 0)),
                pl.BlockSpec((k2, c2), lambda i: (0, 0)),
                pl.BlockSpec((1, c2), lambda i: (0, 0)),
                pl.BlockSpec(wih.shape, lambda i: (0, 0)),
                pl.BlockSpec(whh.shape, lambda i: (0, 0)),
                pl.BlockSpec(bl.shape, lambda i: (0, 0)),
                pl.BlockSpec(wfc.shape, lambda i: (0, 0)),
                pl.BlockSpec(bfc.shape, lambda i: (0, 0)),
            ],
            out_specs=pl.BlockSpec((batch, nc), lambda i: (0, 0)),
            scratch_shapes=[
                pltpu.VMEM((n_frames, n_pix * c2), jnp.float32),
                pltpu.VMEM((seq_len * 8, 4 * hidden), jnp.float32),
            ],
        ),
        compiler_params=pltpu.CompilerParams(dimension_semantics=("arbitrary",)),
    )(a2, w2, b2, wih, whh, bl, wfc, bfc)


# ---------------------------------------------------------------------------
# XLA glue: pool-grouped 3x3 patch extraction (data movement only) and parameter packing.
# ---------------------------------------------------------------------------
def _conv1_patches(x):
    """x: (C, N, H, W) f32 -> (4, 9*C, N*(H/2)*(W/2)).
    Leading axis = 2x2 pool position, K rows ordered (dy, dx, c), lanes ordered (n, y, x)."""
    C, N, H, W = x.shape
    xp = jnp.pad(x, ((0, 0), (0, 0), (1, 1), (1, 1)))
    planes = jnp.stack(
        [xp[:, :, dy:dy + H, dx:dx + W] for dy in range(3) for dx in range(3)], axis=0
    )                                                    # (9, C, N, H, W)
    hp, wp = H // 2, W // 2
    a = planes.reshape(9 * C, N, hp, 2, wp, 2)           # (K, n, y, py, x, px)
    a = a.transpose(3, 5, 0, 1, 2, 4)                    # (py, px, K, n, y, x)
    return a.reshape(4, 9 * C, N * hp * wp)


def _conv2_patches(o1, c1, N, h1, w1):
    """o1: (c1, N*h1*w1) bf16 with lanes (n, y, x) -> (4*(h1/2)*(w1/2)*N, 9*c1).
    Rows ordered (pool_pos, y2, x2, n); cols ordered (dy, dx, c1)."""
    p1 = o1.reshape(c1, N, h1, w1)
    p1p = jnp.pad(p1, ((0, 0), (0, 0), (1, 1), (1, 1)))
    planes = jnp.stack(
        [p1p[:, :, dy:dy + h1, dx:dx + w1] for dy in range(3) for dx in range(3)], axis=0
    )                                                    # (9, c1, N, h1, w1)
    h2, w2 = h1 // 2, w1 // 2
    a = planes.reshape(9, c1, N, h2, 2, w2, 2)           # (dydx, c1, n, y2, py, x2, px)
    a = a.transpose(4, 6, 3, 5, 2, 0, 1)                 # (py, px, y2, x2, n, dydx, c1)
    return a.reshape(4 * h2 * w2 * N, 9 * c1)


def init_params(key, in_ch=1, c1=8, c2=16, hidden=32, num_classes=2, img=16):
    s = img // 4                             # spatial size after two 2x2 maxpools
    feat = c2 * s * s
    ks = jax.random.split(key, 10)

    def u(k, shape, fan_in):
        bound = 1.0 / jnp.sqrt(float(fan_in))
        return jax.random.uniform(k, shape, jnp.float32, -bound, bound)

    # PyTorch-layout parameters (what nn.Conv2d / nn.LSTM / nn.Linear hold).
    w1_pt = u(ks[0], (c1, in_ch, 3, 3), in_ch * 9)
    b1_pt = u(ks[1], (c1,), in_ch * 9)
    w2_pt = u(ks[2], (c2, c1, 3, 3), c1 * 9)
    b2_pt = u(ks[3], (c2,), c1 * 9)
    wih_pt = u(ks[4], (4 * hidden, feat), hidden)      # gates (i, f, g, o); feat order (c, y, x)
    whh_pt = u(ks[5], (4 * hidden, hidden), hidden)
    b_pt = u(ks[6], (4 * hidden,), hidden) + u(ks[7], (4 * hidden,), hidden)   # b_ih + b_hh
    wfc_pt = u(ks[8], (num_classes, hidden), hidden)
    bfc_pt = u(ks[9], (num_classes,), hidden)

    # Init-time repacking: gate permutation to (i, f, o, g), feature rows to (y, x, c),
    # conv weights to (dy, dx, cin) packing, FC pre-transposed.  Costs nothing at runtime.
    gperm = jnp.array([0, 1, 3, 2])                    # ours (i, f, o, g) <- PyTorch (i, f, g, o)

    wih = wih_pt.reshape(4, hidden, c2, s, s)          # (gate, hid, c, y, x)
    wih = wih.transpose(3, 4, 2, 0, 1)[:, :, :, gperm, :]   # (y, x, c, gate', hid)
    wih = wih.reshape(feat, 4 * hidden).astype(jnp.bfloat16)

    whh = whh_pt.reshape(4, hidden, hidden)[gperm].transpose(2, 0, 1)
    whh = whh.reshape(hidden, 4 * hidden).astype(jnp.bfloat16)

    bl = b_pt.reshape(4, hidden)[gperm].reshape(1, 4 * hidden)

    return {
        "conv1_w": jnp.transpose(w1_pt, (0, 2, 3, 1)).reshape(c1, 9 * in_ch),      # (c1, K) f32
        "conv1_b": b1_pt.reshape(c1, 1),
        "conv2_w": jnp.transpose(w2_pt, (2, 3, 1, 0)).reshape(9 * c1, c2).astype(jnp.bfloat16),
        "conv2_b": b2_pt.reshape(1, c2),
        "lstm_wih": wih,
        "lstm_whh": whh,
        "lstm_b": bl,
        "fc_w": wfc_pt.T,                                                          # (hidden, NC)
        "fc_b": bfc_pt.reshape(1, num_classes),
    }


@jax.jit
def mri_sequence_net_forward(x, params):
    """x: (B, T, C, H, W) float32 (PyTorch NCHW frames) -> logits (B, num_classes)."""
    B, T, C, H, W = x.shape
    N = B * T
    # Time-major, channel-major frames (n = t*B + b) so per-step LSTM gate slices are
    # contiguous; this is the only activation transpose in the forward.
    xf = jnp.transpose(x, (2, 1, 0, 3, 4)).reshape(C, N, H, W)

    # Frame encoder stage 1: conv1 + bias + ReLU + pool (VPU rank-1 kernel, bf16 out).
    a1 = _conv1_patches(xf)                                           # (4, 9C, N*(H/2)*(W/2))
    o1 = conv1_relu_pool(a1, params["conv1_w"], params["conv1_b"])    # (c1, N*(H/2)*(W/2)) bf16

    # Frame encoder stage 2 + sequence encoder + classifier: one fused Pallas dispatch.
    c1 = o1.shape[0]
    a2 = _conv2_patches(o1, c1, N, H // 2, W // 2)                    # (4*npix*N, 9*c1) bf16
    n_pix = (H // 4) * (W // 4)
    hidden = params["lstm_whh"].shape[0]
    return conv2_lstm_fc(a2, params["conv2_w"], params["conv2_b"],
                         params["lstm_wih"], params["lstm_whh"], params["lstm_b"],
                         params["fc_w"], params["fc_b"],
                         seq_len=T, batch=B, hidden=hidden, n_pix=n_pix)


if __name__ == "__main__":
    key = jax.random.PRNGKey(0)
    k_x, k_p = jax.random.split(key)

    B, T, C, H, W = 2, 4, 1, 16, 16
    x = jax.random.normal(k_x, (B, T, C, H, W), jnp.float32)
    params = init_params(k_p, in_ch=C, c1=8, c2=16, hidden=32, num_classes=2, img=H)

    logits = mri_sequence_net_forward(x, params)
    jax.block_until_ready(logits)
    assert logits.shape == (B, 2) and logits.dtype == jnp.float32
    print("KERNEL_OK")
</pallas_src>

<mosaic_0001>
module attributes {stable_mosaic.version = 11 : i64} {
  func.func @_conv1_relu_pool_kernel(%arg0: i32, %arg1: memref<4x9x256xf32, #tpu.memory_space<vmem>>, %arg2: memref<8x9xf32, #tpu.memory_space<vmem>>, %arg3: memref<8x1xf32, #tpu.memory_space<vmem>>, %arg4: memref<8x256xbf16, #tpu.memory_space<vmem>>) attributes {dimension_semantics = [#tpu.dimension_semantics<parallel>], iteration_bounds = array<i64: 2>, scalar_prefetch = 0 : i64, scratch_operands = 0 : i64, tpu.core_type = #tpu.core_type<tc>, window_params = [{transform_indices = @transform_0, window_bounds = array<i64: 4, 9, 256>}, {pipeline_mode = #tpu.pipeline_mode<synchronous>, transform_indices = @transform_1, window_bounds = array<i64: 8, 9>}, {pipeline_mode = #tpu.pipeline_mode<synchronous>, transform_indices = @transform_2, window_bounds = array<i64: 8, 1>}, {transform_indices = @transform_3, window_bounds = array<i64: 8, 256>}]} {
    %c0 = arith.constant 0 : index
    %c0_0 = arith.constant 0 : index
    %0 = vector.load %arg2[%c0, %c0_0] : memref<8x9xf32, #tpu.memory_space<vmem>>, vector<8x9xf32>
    %c0_1 = arith.constant 0 : index
    %c0_2 = arith.constant 0 : index
    %1 = vector.load %arg3[%c0_1, %c0_2] : memref<8x1xf32, #tpu.memory_space<vmem>>, vector<8x1xf32>
    %c0_3 = arith.constant 0 : index
    %c0_4 = arith.constant 0 : index
    %c0_5 = arith.constant 0 : index
    %2 = vector.load %arg1[%c0_3, %c0_4, %c0_5] : memref<4x9x256xf32, #tpu.memory_space<vmem>>, vector<1x9x256xf32>
    %3 = vector.shape_cast %2 : vector<1x9x256xf32> to vector<9x256xf32>
    %4 = vector.extract_strided_slice %0 {offsets = [0, 0], sizes = [8, 1], strides = [1, 1]} : vector<8x9xf32> to vector<8x1xf32>
    %5 = vector.extract_strided_slice %3 {offsets = [0, 0], sizes = [1, 256], strides = [1, 1]} : vector<9x256xf32> to vector<1x256xf32>
    %6 = vector.broadcast %4 : vector<8x1xf32> to vector<8x256xf32>
    %7 = vector.broadcast %5 : vector<1x256xf32> to vector<8x256xf32>
    %8 = arith.mulf %6, %7 : vector<8x256xf32>
    %9 = vector.extract_strided_slice %0 {offsets = [0, 1], sizes = [8, 1], strides = [1, 1]} : vector<8x9xf32> to vector<8x1xf32>
    %10 = vector.extract_strided_slice %3 {offsets = [1, 0], sizes = [1, 256], strides = [1, 1]} : vector<9x256xf32> to vector<1x256xf32>
    %11 = vector.broadcast %9 : vector<8x1xf32> to vector<8x256xf32>
    %12 = vector.broadcast %10 : vector<1x256xf32> to vector<8x256xf32>
    %13 = arith.mulf %11, %12 : vector<8x256xf32>
    %14 = arith.addf %8, %13 : vector<8x256xf32>
    %15 = vector.extract_strided_slice %0 {offsets = [0, 2], sizes = [8, 1], strides = [1, 1]} : vector<8x9xf32> to vector<8x1xf32>
    %16 = vector.extract_strided_slice %3 {offsets = [2, 0], sizes = [1, 256], strides = [1, 1]} : vector<9x256xf32> to vector<1x256xf32>
    %17 = vector.broadcast %15 : vector<8x1xf32> to vector<8x256xf32>
    %18 = vector.broadcast %16 : vector<1x256xf32> to vector<8x256xf32>
    %19 = arith.mulf %17, %18 : vector<8x256xf32>
    %20 = arith.addf %14, %19 : vector<8x256xf32>
    %21 = vector.extract_strided_slice %0 {offsets = [0, 3], sizes = [8, 1], strides = [1, 1]} : vector<8x9xf32> to vector<8x1xf32>
    %22 = vector.extract_strided_slice %3 {offsets = [3, 0], sizes = [1, 256], strides = [1, 1]} : vector<9x256xf32> to vector<1x256xf32>
    %23 = vector.broadcast %21 : vector<8x1xf32> to vector<8x256xf32>
    %24 = vector.broadcast %22 : vector<1x256xf32> to vector<8x256xf32>
    %25 = arith.mulf %23, %24 : vector<8x256xf32>
    %26 = arith.addf %20, %25 : vector<8x256xf32>
    %27 = vector.extract_strided_slice %0 {offsets = [0, 4], sizes = [8, 1], strides = [1, 1]} : vector<8x9xf32> to vector<8x1xf32>
    %28 = vector.extract_strided_slice %3 {offsets = [4, 0], sizes = [1, 256], strides = [1, 1]} : vector<9x256xf32> to vector<1x256xf32>
    %29 = vector.broadcast %27 : vector<8x1xf32> to vector<8x256xf32>
    %30 = vector.broadcast %28 : vector<1x256xf32> to vector<8x256xf32>
    %31 = arith.mulf %29, %30 : vector<8x256xf32>
    %32 = arith.addf %26, %31 : vector<8x256xf32>
    %33 = vector.extract_strided_slice %0 {offsets = [0, 5], sizes = [8, 1], strides = [1, 1]} : vector<8x9xf32> to vector<8x1xf32>
    %34 = vector.extract_strided_slice %3 {offsets = [5, 0], sizes = [1, 256], strides = [1, 1]} : vector<9x256xf32> to vector<1x256xf32>
    %35 = vector.broadcast %33 : vector<8x1xf32> to vector<8x256xf32>
    %36 = vector.broadcast %34 : vector<1x256xf32> to vector<8x256xf32>
    %37 = arith.mulf %35, %36 : vector<8x256xf32>
    %38 = arith.addf %32, %37 : vector<8x256xf32>
    %39 = vector.extract_strided_slice %0 {offsets = [0, 6], sizes = [8, 1], strides = [1, 1]} : vector<8x9xf32> to vector<8x1xf32>
    %40 = vector.extract_strided_slice %3 {offsets = [6, 0], sizes = [1, 256], strides = [1, 1]} : vector<9x256xf32> to vector<1x256xf32>
    %41 = vector.broadcast %39 : vector<8x1xf32> to vector<8x256xf32>
    %42 = vector.broadcast %40 : vector<1x256xf32> to vector<8x256xf32>
    %43 = arith.mulf %41, %42 : vector<8x256xf32>
    %44 = arith.addf %38, %43 : vector<8x256xf32>
    %45 = vector.extract_strided_slice %0 {offsets = [0, 7], sizes = [8, 1], strides = [1, 1]} : vector<8x9xf32> to vector<8x1xf32>
    %46 = vector.extract_strided_slice %3 {offsets = [7, 0], sizes = [1, 256], strides = [1, 1]} : vector<9x256xf32> to vector<1x256xf32>
    %47 = vector.broadcast %45 : vector<8x1xf32> to vector<8x256xf32>
    %48 = vector.broadcast %46 : vector<1x256xf32> to vector<8x256xf32>
    %49 = arith.mulf %47, %48 : vector<8x256xf32>
    %50 = arith.addf %44, %49 : vector<8x256xf32>
    %51 = vector.extract_strided_slice %0 {offsets = [0, 8], sizes = [8, 1], strides = [1, 1]} : vector<8x9xf32> to vector<8x1xf32>
    %52 = vector.extract_strided_slice %3 {offsets = [8, 0], sizes = [1, 256], strides = [1, 1]} : vector<9x256xf32> to vector<1x256xf32>
    %53 = vector.broadcast %51 : vector<8x1xf32> to vector<8x256xf32>
    %54 = vector.broadcast %52 : vector<1x256xf32> to vector<8x256xf32>
    %55 = arith.mulf %53, %54 : vector<8x256xf32>
    %56 = arith.addf %50, %55 : vector<8x256xf32>
    %57 = vector.broadcast %1 : vector<8x1xf32> to vector<8x256xf32>
    %58 = arith.addf %56, %57 : vector<8x256xf32>
    %cst = arith.constant 0.000000e+00 : f32
    %59 = vector.broadcast %cst : f32 to vector<8x256xf32>
    %60 = arith.maximumf %58, %59 : vector<8x256xf32>
    %c1 = arith.constant 1 : index
    %c0_6 = arith.constant 0 : index
    %c0_7 = arith.constant 0 : index
    %61 = vector.load %arg1[%c1, %c0_6, %c0_7] : memref<4x9x256xf32, #tpu.memory_space<vmem>>, vector<1x9x256xf32>
    %62 = vector.shape_cast %61 : vector<1x9x256xf32> to vector<9x256xf32>
    %63 = vector.extract_strided_slice %0 {offsets = [0, 0], sizes = [8, 1], strides = [1, 1]} : vector<8x9xf32> to vector<8x1xf32>
    %64 = vector.extract_strided_slice %62 {offsets = [0, 0], sizes = [1, 256], strides = [1, 1]} : vector<9x256xf32> to vector<1x256xf32>
    %65 = vector.broadcast %63 : vector<8x1xf32> to vector<8x256xf32>
    %66 = vector.broadcast %64 : vector<1x256xf32> to vector<8x256xf32>
    %67 = arith.mulf %65, %66 : vector<8x256xf32>
    %68 = vector.extract_strided_slice %0 {offsets = [0, 1], sizes = [8, 1], strides = [1, 1]} : vector<8x9xf32> to vector<8x1xf32>
    %69 = vector.extract_strided_slice %62 {offsets = [1, 0], sizes = [1, 256], strides = [1, 1]} : vector<9x256xf32> to vector<1x256xf32>
    %70 = vector.broadcast %68 : vector<8x1xf32> to vector<8x256xf32>
    %71 = vector.broadcast %69 : vector<1x256xf32> to vector<8x256xf32>
    %72 = arith.mulf %70, %71 : vector<8x256xf32>
    %73 = arith.addf %67, %72 : vector<8x256xf32>
    %74 = vector.extract_strided_slice %0 {offsets = [0, 2], sizes = [8, 1], strides = [1, 1]} : vector<8x9xf32> to vector<8x1xf32>
    %75 = vector.extract_strided_slice %62 {offsets = [2, 0], sizes = [1, 256], strides = [1, 1]} : vector<9x256xf32> to vector<1x256xf32>
    %76 = vector.broadcast %74 : vector<8x1xf32> to vector<8x256xf32>
    %77 = vector.broadcast %75 : vector<1x256xf32> to vector<8x256xf32>
    %78 = arith.mulf %76, %77 : vector<8x256xf32>
    %79 = arith.addf %73, %78 : vector<8x256xf32>
    %80 = vector.extract_strided_slice %0 {offsets = [0, 3], sizes = [8, 1], strides = [1, 1]} : vector<8x9xf32> to vector<8x1xf32>
    %81 = vector.extract_strided_slice %62 {offsets = [3, 0], sizes = [1, 256], strides = [1, 1]} : vector<9x256xf32> to vector<1x256xf32>
    %82 = vector.broadcast %80 : vector<8x1xf32> to vector<8x256xf32>
    %83 = vector.broadcast %81 : vector<1x256xf32> to vector<8x256xf32>
    %84 = arith.mulf %82, %83 : vector<8x256xf32>
    %85 = arith.addf %79, %84 : vector<8x256xf32>
    %86 = vector.extract_strided_slice %0 {offsets = [0, 4], sizes = [8, 1], strides = [1, 1]} : vector<8x9xf32> to vector<8x1xf32>
    %87 = vector.extract_strided_slice %62 {offsets = [4, 0], sizes = [1, 256], strides = [1, 1]} : vector<9x256xf32> to vector<1x256xf32>
    %88 = vector.broadcast %86 : vector<8x1xf32> to vector<8x256xf32>
    %89 = vector.broadcast %87 : vector<1x256xf32> to vector<8x256xf32>
    %90 = arith.mulf %88, %89 : vector<8x256xf32>
    %91 = arith.addf %85, %90 : vector<8x256xf32>
    %92 = vector.extract_strided_slice %0 {offsets = [0, 5], sizes = [8, 1], strides = [1, 1]} : vector<8x9xf32> to vector<8x1xf32>
    %93 = vector.extract_strided_slice %62 {offsets = [5, 0], sizes = [1, 256], strides = [1, 1]} : vector<9x256xf32> to vector<1x256xf32>
    %94 = vector.broadcast %92 : vector<8x1xf32> to vector<8x256xf32>
    %95 = vector.broadcast %93 : vector<1x256xf32> to vector<8x256xf32>
    %96 = arith.mulf %94, %95 : vector<8x256xf32>
    %97 = arith.addf %91, %96 : vector<8x256xf32>
    %98 = vector.extract_strided_slice %0 {offsets = [0, 6], sizes = [8, 1], strides = [1, 1]} : vector<8x9xf32> to vector<8x1xf32>
    %99 = vector.extract_strided_slice %62 {offsets = [6, 0], sizes = [1, 256], strides = [1, 1]} : vector<9x256xf32> to vector<1x256xf32>
    %100 = vector.broadcast %98 : vector<8x1xf32> to vector<8x256xf32>
    %101 = vector.broadcast %99 : vector<1x256xf32> to vector<8x256xf32>
    %102 = arith.mulf %100, %101 : vector<8x256xf32>
    %103 = arith.addf %97, %102 : vector<8x256xf32>
    %104 = vector.extract_strided_slice %0 {offsets = [0, 7], sizes = [8, 1], strides = [1, 1]} : vector<8x9xf32> to vector<8x1xf32>
    %105 = vector.extract_strided_slice %62 {offsets = [7, 0], sizes = [1, 256], strides = [1, 1]} : vector<9x256xf32> to vector<1x256xf32>
    %106 = vector.broadcast %104 : vector<8x1xf32> to vector<8x256xf32>
    %107 = vector.broadcast %105 : vector<1x256xf32> to vector<8x256xf32>
    %108 = arith.mulf %106, %107 : vector<8x256xf32>
    %109 = arith.addf %103, %108 : vector<8x256xf32>
    %110 = vector.extract_strided_slice %0 {offsets = [0, 8], sizes = [8, 1], strides = [1, 1]} : vector<8x9xf32> to vector<8x1xf32>
    %111 = vector.extract_strided_slice %62 {offsets = [8, 0], sizes = [1, 256], strides = [1, 1]} : vector<9x256xf32> to vector<1x256xf32>
    %112 = vector.broadcast %110 : vector<8x1xf32> to vector<8x256xf32>
    %113 = vector.broadcast %111 : vector<1x256xf32> to vector<8x256xf32>
    %114 = arith.mulf %112, %113 : vector<8x256xf32>
    %115 = arith.addf %109, %114 : vector<8x256xf32>
    %116 = vector.broadcast %1 : vector<8x1xf32> to vector<8x256xf32>
    %117 = arith.addf %115, %116 : vector<8x256xf32>
    %cst_8 = arith.constant 0.000000e+00 : f32
    %118 = vector.broadcast %cst_8 : f32 to vector<8x256xf32>
    %119 = arith.maximumf %117, %118 : vector<8x256xf32>
    %120 = arith.maximumf %60, %119 : vector<8x256xf32>
    %c2 = arith.constant 2 : index
    %c0_9 = arith.constant 0 : index
    %c0_10 = arith.constant 0 : index
    %121 = vector.load %arg1[%c2, %c0_9, %c0_10] : memref<4x9x256xf32, #tpu.memory_space<vmem>>, vector<1x9x256xf32>
    %122 = vector.shape_cast %121 : vector<1x9x256xf32> to vector<9x256xf32>
    %123 = vector.extract_strided_slice %0 {offsets = [0, 0], sizes = [8, 1], strides = [1, 1]} : vector<8x9xf32> to vector<8x1xf32>
    %124 = vector.extract_strided_slice %122 {offsets = [0, 0], sizes = [1, 256], strides = [1, 1]} : vector<9x256xf32> to vector<1x256xf32>
    %125 = vector.broadcast %123 : vector<8x1xf32> to vector<8x256xf32>
    %126 = vector.broadcast %124 : vector<1x256xf32> to vector<8x256xf32>
    %127 = arith.mulf %125, %126 : vector<8x256xf32>
    %128 = vector.extract_strided_slice %0 {offsets = [0, 1], sizes = [8, 1], strides = [1, 1]} : vector<8x9xf32> to vector<8x1xf32>
    %129 = vector.extract_strided_slice %122 {offsets = [1, 0], sizes = [1, 256], strides = [1, 1]} : vector<9x256xf32> to vector<1x256xf32>
    %130 = vector.broadcast %128 : vector<8x1xf32> to vector<8x256xf32>
    %131 = vector.broadcast %129 : vector<1x256xf32> to vector<8x256xf32>
    %132 = arith.mulf %130, %131 : vector<8x256xf32>
    %133 = arith.addf %127, %132 : vector<8x256xf32>
    %134 = vector.extract_strided_slice %0 {offsets = [0, 2], sizes = [8, 1], strides = [1, 1]} : vector<8x9xf32> to vector<8x1xf32>
    %135 = vector.extract_strided_slice %122 {offsets = [2, 0], sizes = [1, 256], strides = [1, 1]} : vector<9x256xf32> to vector<1x256xf32>
    %136 = vector.broadcast %134 : vector<8x1xf32> to vector<8x256xf32>
    %137 = vector.broadcast %135 : vector<1x256xf32> to vector<8x256xf32>
    %138 = arith.mulf %136, %137 : vector<8x256xf32>
    %139 = arith.addf %133, %138 : vector<8x256xf32>
    %140 = vector.extract_strided_slice %0 {offsets = [0, 3], sizes = [8, 1], strides = [1, 1]} : vector<8x9xf32> to vector<8x1xf32>
    %141 = vector.extract_strided_slice %122 {offsets = [3, 0], sizes = [1, 256], strides = [1, 1]} : vector<9x256xf32> to vector<1x256xf32>
    %142 = vector.broadcast %140 : vector<8x1xf32> to vector<8x256xf32>
    %143 = vector.broadcast %141 : vector<1x256xf32> to vector<8x256xf32>
    %144 = arith.mulf %142, %143 : vector<8x256xf32>
    %145 = arith.addf %139, %144 : vector<8x256xf32>
    %146 = vector.extract_strided_slice %0 {offsets = [0, 4], sizes = [8, 1], strides = [1, 1]} : vector<8x9xf32> to vector<8x1xf32>
    %147 = vector.extract_strided_slice %122 {offsets = [4, 0], sizes = [1, 256], strides = [1, 1]} : vector<9x256xf32> to vector<1x256xf32>
    %148 = vector.broadcast %146 : vector<8x1xf32> to vector<8x256xf32>
    %149 = vector.broadcast %147 : vector<1x256xf32> to vector<8x256xf32>
    %150 = arith.mulf %148, %149 : vector<8x256xf32>
    %151 = arith.addf %145, %150 : vector<8x256xf32>
    %152 = vector.extract_strided_slice %0 {offsets = [0, 5], sizes = [8, 1], strides = [1, 1]} : vector<8x9xf32> to vector<8x1xf32>
    %153 = vector.extract_strided_slice %122 {offsets = [5, 0], sizes = [1, 256], strides = [1, 1]} : vector<9x256xf32> to vector<1x256xf32>
    %154 = vector.broadcast %152 : vector<8x1xf32> to vector<8x256xf32>
    %155 = vector.broadcast %153 : vector<1x256xf32> to vector<8x256xf32>
    %156 = arith.mulf %154, %155 : vector<8x256xf32>
    %157 = arith.addf %151, %156 : vector<8x256xf32>
    %158 = vector.extract_strided_slice %0 {offsets = [0, 6], sizes = [8, 1], strides = [1, 1]} : vector<8x9xf32> to vector<8x1xf32>
    %159 = vector.extract_strided_slice %122 {offsets = [6, 0], sizes = [1, 256], strides = [1, 1]} : vector<9x256xf32> to vector<1x256xf32>
    %160 = vector.broadcast %158 : vector<8x1xf32> to vector<8x256xf32>
    %161 = vector.broadcast %159 : vector<1x256xf32> to vector<8x256xf32>
    %162 = arith.mulf %160, %161 : vector<8x256xf32>
    %163 = arith.addf %157, %162 : vector<8x256xf32>
    %164 = vector.extract_strided_slice %0 {offsets = [0, 7], sizes = [8, 1], strides = [1, 1]} : vector<8x9xf32> to vector<8x1xf32>
    %165 = vector.extract_strided_slice %122 {offsets = [7, 0], sizes = [1, 256], strides = [1, 1]} : vector<9x256xf32> to vector<1x256xf32>
    %166 = vector.broadcast %164 : vector<8x1xf32> to vector<8x256xf32>
    %167 = vector.broadcast %165 : vector<1x256xf32> to vector<8x256xf32>
    %168 = arith.mulf %166, %167 : vector<8x256xf32>
    %169 = arith.addf %163, %168 : vector<8x256xf32>
    %170 = vector.extract_strided_slice %0 {offsets = [0, 8], sizes = [8, 1], strides = [1, 1]} : vector<8x9xf32> to vector<8x1xf32>
    %171 = vector.extract_strided_slice %122 {offsets = [8, 0], sizes = [1, 256], strides = [1, 1]} : vector<9x256xf32> to vector<1x256xf32>
    %172 = vector.broadcast %170 : vector<8x1xf32> to vector<8x256xf32>
    %173 = vector.broadcast %171 : vector<1x256xf32> to vector<8x256xf32>
    %174 = arith.mulf %172, %173 : vector<8x256xf32>
    %175 = arith.addf %169, %174 : vector<8x256xf32>
    %176 = vector.broadcast %1 : vector<8x1xf32> to vector<8x256xf32>
    %177 = arith.addf %175, %176 : vector<8x256xf32>
    %cst_11 = arith.constant 0.000000e+00 : f32
    %178 = vector.broadcast %cst_11 : f32 to vector<8x256xf32>
    %179 = arith.maximumf %177, %178 : vector<8x256xf32>
    %180 = arith.maximumf %120, %179 : vector<8x256xf32>
    %c3 = arith.constant 3 : index
    %c0_12 = arith.constant 0 : index
    %c0_13 = arith.constant 0 : index
    %181 = vector.load %arg1[%c3, %c0_12, %c0_13] : memref<4x9x256xf32, #tpu.memory_space<vmem>>, vector<1x9x256xf32>
    %182 = vector.shape_cast %181 : vector<1x9x256xf32> to vector<9x256xf32>
    %183 = vector.extract_strided_slice %0 {offsets = [0, 0], sizes = [8, 1], strides = [1, 1]} : vector<8x9xf32> to vector<8x1xf32>
    %184 = vector.extract_strided_slice %182 {offsets = [0, 0], sizes = [1, 256], strides = [1, 1]} : vector<9x256xf32> to vector<1x256xf32>
    %185 = vector.broadcast %183 : vector<8x1xf32> to vector<8x256xf32>
    %186 = vector.broadcast %184 : vector<1x256xf32> to vector<8x256xf32>
    %187 = arith.mulf %185, %186 : vector<8x256xf32>
    %188 = vector.extract_strided_slice %0 {offsets = [0, 1], sizes = [8, 1], strides = [1, 1]} : vector<8x9xf32> to vector<8x1xf32>
    %189 = vector.extract_strided_slice %182 {offsets = [1, 0], sizes = [1, 256], strides = [1, 1]} : vector<9x256xf32> to vector<1x256xf32>
    %190 = vector.broadcast %188 : vector<8x1xf32> to vector<8x256xf32>
    %191 = vector.broadcast %189 : vector<1x256xf32> to vector<8x256xf32>
    %192 = arith.mulf %190, %191 : vector<8x256xf32>
    %193 = arith.addf %187, %192 : vector<8x256xf32>
    %194 = vector.extract_strided_slice %0 {offsets = [0, 2], sizes = [8, 1], strides = [1, 1]} : vector<8x9xf32> to vector<8x1xf32>
    %195 = vector.extract_strided_slice %182 {offsets = [2, 0], sizes = [1, 256], strides = [1, 1]} : vector<9x256xf32> to vector<1x256xf32>
    %196 = vector.broadcast %194 : vector<8x1xf32> to vector<8x256xf32>
    %197 = vector.broadcast %195 : vector<1x256xf32> to vector<8x256xf32>
    %198 = arith.mulf %196, %197 : vector<8x256xf32>
    %199 = arith.addf %193, %198 : vector<8x256xf32>
    %200 = vector.extract_strided_slice %0 {offsets = [0, 3], sizes = [8, 1], strides = [1, 1]} : vector<8x9xf32> to vector<8x1xf32>
    %201 = vector.extract_strided_slice %182 {offsets = [3, 0], sizes = [1, 256], strides = [1, 1]} : vector<9x256xf32> to vector<1x256xf32>
    %202 = vector.broadcast %200 : vector<8x1xf32> to vector<8x256xf32>
    %203 = vector.broadcast %201 : vector<1x256xf32> to vector<8x256xf32>
    %204 = arith.mulf %202, %203 : vector<8x256xf32>
    %205 = arith.addf %199, %204 : vector<8x256xf32>
    %206 = vector.extract_strided_slice %0 {offsets = [0, 4], sizes = [8, 1], strides = [1, 1]} : vector<8x9xf32> to vector<8x1xf32>
    %207 = vector.extract_strided_slice %182 {offsets = [4, 0], sizes = [1, 256], strides = [1, 1]} : vector<9x256xf32> to vector<1x256xf32>
    %208 = vector.broadcast %206 : vector<8x1xf32> to vector<8x256xf32>
    %209 = vector.broadcast %207 : vector<1x256xf32> to vector<8x256xf32>
    %210 = arith.mulf %208, %209 : vector<8x256xf32>
    %211 = arith.addf %205, %210 : vector<8x256xf32>
    %212 = vector.extract_strided_slice %0 {offsets = [0, 5], sizes = [8, 1], strides = [1, 1]} : vector<8x9xf32> to vector<8x1xf32>
    %213 = vector.extract_strided_slice %182 {offsets = [5, 0], sizes = [1, 256], strides = [1, 1]} : vector<9x256xf32> to vector<1x256xf32>
    %214 = vector.broadcast %212 : vector<8x1xf32> to vector<8x256xf32>
    %215 = vector.broadcast %213 : vector<1x256xf32> to vector<8x256xf32>
    %216 = arith.mulf %214, %215 : vector<8x256xf32>
    %217 = arith.addf %211, %216 : vector<8x256xf32>
    %218 = vector.extract_strided_slice %0 {offsets = [0, 6], sizes = [8, 1], strides = [1, 1]} : vector<8x9xf32> to vector<8x1xf32>
    %219 = vector.extract_strided_slice %182 {offsets = [6, 0], sizes = [1, 256], strides = [1, 1]} : vector<9x256xf32> to vector<1x256xf32>
    %220 = vector.broadcast %218 : vector<8x1xf32> to vector<8x256xf32>
    %221 = vector.broadcast %219 : vector<1x256xf32> to vector<8x256xf32>
    %222 = arith.mulf %220, %221 : vector<8x256xf32>
    %223 = arith.addf %217, %222 : vector<8x256xf32>
    %224 = vector.extract_strided_slice %0 {offsets = [0, 7], sizes = [8, 1], strides = [1, 1]} : vector<8x9xf32> to vector<8x1xf32>
    %225 = vector.extract_strided_slice %182 {offsets = [7, 0], sizes = [1, 256], strides = [1, 1]} : vector<9x256xf32> to vector<1x256xf32>
    %226 = vector.broadcast %224 : vector<8x1xf32> to vector<8x256xf32>
    %227 = vector.broadcast %225 : vector<1x256xf32> to vector<8x256xf32>
    %228 = arith.mulf %226, %227 : vector<8x256xf32>
    %229 = arith.addf %223, %228 : vector<8x256xf32>
    %230 = vector.extract_strided_slice %0 {offsets = [0, 8], sizes = [8, 1], strides = [1, 1]} : vector<8x9xf32> to vector<8x1xf32>
    %231 = vector.extract_strided_slice %182 {offsets = [8, 0], sizes = [1, 256], strides = [1, 1]} : vector<9x256xf32> to vector<1x256xf32>
    %232 = vector.broadcast %230 : vector<8x1xf32> to vector<8x256xf32>
    %233 = vector.broadcast %231 : vector<1x256xf32> to vector<8x256xf32>
    %234 = arith.mulf %232, %233 : vector<8x256xf32>
    %235 = arith.addf %229, %234 : vector<8x256xf32>
    %236 = vector.broadcast %1 : vector<8x1xf32> to vector<8x256xf32>
    %237 = arith.addf %235, %236 : vector<8x256xf32>
    %cst_14 = arith.constant 0.000000e+00 : f32
    %238 = vector.broadcast %cst_14 : f32 to vector<8x256xf32>
    %239 = arith.maximumf %237, %238 : vector<8x256xf32>
    %240 = arith.maximumf %180, %239 : vector<8x256xf32>
    %241 = arith.truncf %240 : vector<8x256xf32> to vector<8x256xbf16>
    %c0_15 = arith.constant 0 : index
    %c0_16 = arith.constant 0 : index
    %242 = vector.load %arg4[%c0_15, %c0_16] : memref<8x256xbf16, #tpu.memory_space<vmem>>, vector<8x256xbf16>
    tpu.vector_store %arg4[%c0_15, %c0_16], %241 {strides = array<i32>} : memref<8x256xbf16, #tpu.memory_space<vmem>>, vector<8x256xbf16>,
    return
  }
  func.func @transform_0(%arg0: i32) -> (i32, i32, i32) {
    %c0_i32 = arith.constant 0 : i32
    %c0_i32_0 = arith.constant 0 : i32
    %c0_i32_1 = arith.constant 0 : i32
    return %c0_i32, %c0_i32_0, %arg0 : i32, i32, i32
  }
  func.func @transform_1(%arg0: i32) -> (i32, i32) {
    %c0_i32 = arith.constant 0 : i32
    %c0_i32_0 = arith.constant 0 : i32
    %c0_i32_1 = arith.constant 0 : i32
    return %c0_i32, %c0_i32_0 : i32, i32
  }
  func.func @transform_2(%arg0: i32) -> (i32, i32) {
    %c0_i32 = arith.constant 0 : i32
    %c0_i32_0 = arith.constant 0 : i32
    %c0_i32_1 = arith.constant 0 : i32
    return %c0_i32, %c0_i32_0 : i32, i32
  }
  func.func @transform_3(%arg0: i32) -> (i32, i32) {
    %c0_i32 = arith.constant 0 : i32
    %c0_i32_0 = arith.constant 0 : i32
    return %c0_i32, %arg0 : i32, i32
  }
}

module attributes {stable_mosaic.version = 11 : i64} {
  func.func @_conv2_lstm_fc_kernel(%arg0: i32, %arg1: memref<512x72xbf16, #tpu.memory_space<vmem>>, %arg2: memref<72x16xbf16, #tpu.memory_space<vmem>>, %arg3: memref<1x16xf32, #tpu.memory_space<vmem>>, %arg4: memref<256x128xbf16, #tpu.memory_space<vmem>>, %arg5: memref<32x128xbf16, #tpu.memory_space<vmem>>, %arg6: memref<1x128xf32, #tpu.memory_space<vmem>>, %arg7: memref<32x2xf32, #tpu.memory_space<vmem>>, %arg8: memref<1x2xf32, #tpu.memory_space<vmem>>, %arg9: memref<2x2xf32, #tpu.memory_space<vmem>>, %arg10: memref<8x256xf32, #tpu.memory_space<vmem>>, %arg11: memref<32x128xf32, #tpu.memory_space<vmem>>) attributes {dimension_semantics = [#tpu.dimension_semantics<arbitrary>], iteration_bounds = array<i64: 1>, scalar_prefetch = 0 : i64, scratch_operands = 2 : i64, tpu.core_type = #tpu.core_type<tc>, window_params = [{pipeline_mode = #tpu.pipeline_mode<synchronous>, transform_indices = @transform_0, window_bounds = array<i64: 512, 72>}, {pipeline_mode = #tpu.pipeline_mode<synchronous>, transform_indices = @transform_1, window_bounds = array<i64: 72, 16>}, {pipeline_mode = #tpu.pipeline_mode<synchronous>, transform_indices = @transform_2, window_bounds = array<i64: 1, 16>}, {pipeline_mode = #tpu.pipeline_mode<synchronous>, transform_indices = @transform_3, window_bounds = array<i64: 256, 128>}, {pipeline_mode = #tpu.pipeline_mode<synchronous>, transform_indices = @transform_4, window_bounds = array<i64: 32, 128>}, {pipeline_mode = #tpu.pipeline_mode<synchronous>, transform_indices = @transform_5, window_bounds = array<i64: 1, 128>}, {pipeline_mode = #tpu.pipeline_mode<synchronous>, transform_indices = @transform_6, window_bounds = array<i64: 32, 2>}, {pipeline_mode = #tpu.pipeline_mode<synchronous>, transform_indices = @transform_7, window_bounds = array<i64: 1, 2>}, {pipeline_mode = #tpu.pipeline_mode<synchronous>, transform_indices = @transform_8, window_bounds = array<i64: 2, 2>}]} {
    %c0 = arith.constant 0 : index
    %c0_0 = arith.constant 0 : index
    %0 = vector.load %arg1[%c0, %c0_0] : memref<512x72xbf16, #tpu.memory_space<vmem>>, vector<512x72xbf16>
    %c0_1 = arith.constant 0 : index
    %c0_2 = arith.constant 0 : index
    %1 = vector.load %arg2[%c0_1, %c0_2] : memref<72x16xbf16, #tpu.memory_space<vmem>>, vector<72x16xbf16>
    %cst = arith.constant dense<0.000000e+00> : vector<512x16xf32>
    %2 = tpu.matmul %0, %1, %cst {dimension_numbers = #tpu.dot_dimension_numbers<[1], [0], [0], [1], [0, 0, 1, 1], [], []>} : vector<512x72xbf16>, vector<72x16xbf16>, vector<512x16xf32> -> vector<512x16xf32>
    %c0_3 = arith.constant 0 : index
    %c0_4 = arith.constant 0 : index
    %3 = vector.load %arg3[%c0_3, %c0_4] : memref<1x16xf32, #tpu.memory_space<vmem>>, vector<1x16xf32>
    %4 = vector.broadcast %3 : vector<1x16xf32> to vector<512x16xf32>
    %5 = arith.addf %2, %4 : vector<512x16xf32>
    %cst_5 = arith.constant 0.000000e+00 : f32
    %6 = vector.broadcast %cst_5 : f32 to vector<512x16xf32>
    %7 = arith.maximumf %5, %6 : vector<512x16xf32>
    %8 = vector.extract_strided_slice %7 {offsets = [0, 0], sizes = [128, 16], strides = [1, 1]} : vector<512x16xf32> to vector<128x16xf32>
    %9 = vector.extract_strided_slice %7 {offsets = [128, 0], sizes = [128, 16], strides = [1, 1]} : vector<512x16xf32> to vector<128x16xf32>
    %10 = arith.maximumf %8, %9 : vector<128x16xf32>
    %11 = vector.extract_strided_slice %7 {offsets = [256, 0], sizes = [128, 16], strides = [1, 1]} : vector<512x16xf32> to vector<128x16xf32>
    %12 = vector.extract_strided_slice %7 {offsets = [384, 0], sizes = [128, 16], strides = [1, 1]} : vector<512x16xf32> to vector<128x16xf32>
    %13 = arith.maximumf %11, %12 : vector<128x16xf32>
    %14 = arith.maximumf %10, %13 : vector<128x16xf32>
    %15 = vector.extract_strided_slice %14 {offsets = [0, 0], sizes = [8, 16], strides = [1, 1]} : vector<128x16xf32> to vector<8x16xf32>
    %c0_6 = arith.constant 0 : index
    %c0_7 = arith.constant 0 : index
    %16 = vector.load %arg10[%c0_6, %c0_7] : memref<8x256xf32, #tpu.memory_space<vmem>>, vector<8x16xf32>
    tpu.vector_store %arg10[%c0_6, %c0_7], %15 {strides = array<i32>} : memref<8x256xf32, #tpu.memory_space<vmem>>, vector<8x16xf32>,
    %17 = vector.extract_strided_slice %14 {offsets = [8, 0], sizes = [8, 16], strides = [1, 1]} : vector<128x16xf32> to vector<8x16xf32>
    %c0_8 = arith.constant 0 : index
    %c16 = arith.constant 16 : index
    %18 = vector.load %arg10[%c0_8, %c16] : memref<8x256xf32, #tpu.memory_space<vmem>>, vector<8x16xf32>
    tpu.vector_store %arg10[%c0_8, %c16], %17 {strides = array<i32>} : memref<8x256xf32, #tpu.memory_space<vmem>>, vector<8x16xf32>,
    %19 = vector.extract_strided_slice %14 {offsets = [16, 0], sizes = [8, 16], strides = [1, 1]} : vector<128x16xf32> to vector<8x16xf32>
    %c0_9 = arith.constant 0 : index
    %c32 = arith.constant 32 : index
    %20 = vector.load %arg10[%c0_9, %c32] : memref<8x256xf32, #tpu.memory_space<vmem>>, vector<8x16xf32>
    tpu.vector_store %arg10[%c0_9, %c32], %19 {strides = array<i32>} : memref<8x256xf32, #tpu.memory_space<vmem>>, vector<8x16xf32>,
    %21 = vector.extract_strided_slice %14 {offsets = [24, 0], sizes = [8, 16], strides = [1, 1]} : vector<128x16xf32> to vector<8x16xf32>
    %c0_10 = arith.constant 0 : index
    %c48 = arith.constant 48 : index
    %22 = vector.load %arg10[%c0_10, %c48] : memref<8x256xf32, #tpu.memory_space<vmem>>, vector<8x16xf32>
    tpu.vector_store %arg10[%c0_10, %c48], %21 {strides = array<i32>} : memref<8x256xf32, #tpu.memory_space<vmem>>, vector<8x16xf32>,
    %23 = vector.extract_strided_slice %14 {offsets = [32, 0], sizes = [8, 16], strides = [1, 1]} : vector<128x16xf32> to vector<8x16xf32>
    %c0_11 = arith.constant 0 : index
    %c64 = arith.constant 64 : index
    %24 = vector.load %arg10[%c0_11, %c64] : memref<8x256xf32, #tpu.memory_space<vmem>>, vector<8x16xf32>
    tpu.vector_store %arg10[%c0_11, %c64], %23 {strides = array<i32>} : memref<8x256xf32, #tpu.memory_space<vmem>>, vector<8x16xf32>,
    %25 = vector.extract_strided_slice %14 {offsets = [40, 0], sizes = [8, 16], strides = [1, 1]} : vector<128x16xf32> to vector<8x16xf32>
    %c0_12 = arith.constant 0 : index
    %c80 = arith.constant 80 : index
    %26 = vector.load %arg10[%c0_12, %c80] : memref<8x256xf32, #tpu.memory_space<vmem>>, vector<8x16xf32>
    tpu.vector_store %arg10[%c0_12, %c80], %25 {strides = array<i32>} : memref<8x256xf32, #tpu.memory_space<vmem>>, vector<8x16xf32>,
    %27 = vector.extract_strided_slice %14 {offsets = [48, 0], sizes = [8, 16], strides = [1, 1]} : vector<128x16xf32> to vector<8x16xf32>
    %c0_13 = arith.constant 0 : index
    %c96 = arith.constant 96 : index
    %28 = vector.load %arg10[%c0_13, %c96] : memref<8x256xf32, #tpu.memory_space<vmem>>, vector<8x16xf32>
    tpu.vector_store %arg10[%c0_13, %c96], %27 {strides = array<i32>} : memref<8x256xf32, #tpu.memory_space<vmem>>, vector<8x16xf32>,
    %29 = vector.extract_strided_slice %14 {offsets = [56, 0], sizes = [8, 16], strides = [1, 1]} : vector<128x16xf32> to vector<8x16xf32>
    %c0_14 = arith.constant 0 : index
    %c112 = arith.constant 112 : index
    %30 = vector.load %arg10[%c0_14, %c112] : memref<8x256xf32, #tpu.memory_space<vmem>>, vector<8x16xf32>
    tpu.vector_store %arg10[%c0_14, %c112], %29 {strides = array<i32>} : memref<8x256xf32, #tpu.memory_space<vmem>>, vector<8x16xf32>,
    %31 = vector.extract_strided_slice %14 {offsets = [64, 0], sizes = [8, 16], strides = [1, 1]} : vector<128x16xf32> to vector<8x16xf32>
    %c0_15 = arith.constant 0 : index
    %c128 = arith.constant 128 : index
    %32 = vector.load %arg10[%c0_15, %c128] : memref<8x256xf32, #tpu.memory_space<vmem>>, vector<8x16xf32>
    tpu.vector_store %arg10[%c0_15, %c128], %31 {strides = array<i32>} : memref<8x256xf32, #tpu.memory_space<vmem>>, vector<8x16xf32>,
    %33 = vector.extract_strided_slice %14 {offsets = [72, 0], sizes = [8, 16], strides = [1, 1]} : vector<128x16xf32> to vector<8x16xf32>
    %c0_16 = arith.constant 0 : index
    %c144 = arith.constant 144 : index
    %34 = vector.load %arg10[%c0_16, %c144] : memref<8x256xf32, #tpu.memory_space<vmem>>, vector<8x16xf32>
    tpu.vector_store %arg10[%c0_16, %c144], %33 {strides = array<i32>} : memref<8x256xf32, #tpu.memory_space<vmem>>, vector<8x16xf32>,
    %35 = vector.extract_strided_slice %14 {offsets = [80, 0], sizes = [8, 16], strides = [1, 1]} : vector<128x16xf32> to vector<8x16xf32>
    %c0_17 = arith.constant 0 : index
    %c160 = arith.constant 160 : index
    %36 = vector.load %arg10[%c0_17, %c160] : memref<8x256xf32, #tpu.memory_space<vmem>>, vector<8x16xf32>
    tpu.vector_store %arg10[%c0_17, %c160], %35 {strides = array<i32>} : memref<8x256xf32, #tpu.memory_space<vmem>>, vector<8x16xf32>,
    %37 = vector.extract_strided_slice %14 {offsets = [88, 0], sizes = [8, 16], strides = [1, 1]} : vector<128x16xf32> to vector<8x16xf32>
    %c0_18 = arith.constant 0 : index
    %c176 = arith.constant 176 : index
    %38 = vector.load %arg10[%c0_18, %c176] : memref<8x256xf32, #tpu.memory_space<vmem>>, vector<8x16xf32>
    tpu.vector_store %arg10[%c0_18, %c176], %37 {strides = array<i32>} : memref<8x256xf32, #tpu.memory_space<vmem>>, vector<8x16xf32>,
    %39 = vector.extract_strided_slice %14 {offsets = [96, 0], sizes = [8, 16], strides = [1, 1]} : vector<128x16xf32> to vector<8x16xf32>
    %c0_19 = arith.constant 0 : index
    %c192 = arith.constant 192 : index
    %40 = vector.load %arg10[%c0_19, %c192] : memref<8x256xf32, #tpu.memory_space<vmem>>, vector<8x16xf32>
    tpu.vector_store %arg10[%c0_19, %c192], %39 {strides = array<i32>} : memref<8x256xf32, #tpu.memory_space<vmem>>, vector<8x16xf32>,
    %41 = vector.extract_strided_slice %14 {offsets = [104, 0], sizes = [8, 16], strides = [1, 1]} : vector<128x16xf32> to vector<8x16xf32>
    %c0_20 = arith.constant 0 : index
    %c208 = arith.constant 208 : index
    %42 = vector.load %arg10[%c0_20, %c208] : memref<8x256xf32, #tpu.memory_space<vmem>>, vector<8x16xf32>
    tpu.vector_store %arg10[%c0_20, %c208], %41 {strides = array<i32>} : memref<8x256xf32, #tpu.memory_space<vmem>>, vector<8x16xf32>,
    %43 = vector.extract_strided_slice %14 {offsets = [112, 0], sizes = [8, 16], strides = [1, 1]} : vector<128x16xf32> to vector<8x16xf32>
    %c0_21 = arith.constant 0 : index
    %c224 = arith.constant 224 : index
    %44 = vector.load %arg10[%c0_21, %c224] : memref<8x256xf32, #tpu.memory_space<vmem>>, vector<8x16xf32>
    tpu.vector_store %arg10[%c0_21, %c224], %43 {strides = array<i32>} : memref<8x256xf32, #tpu.memory_space<vmem>>, vector<8x16xf32>,
    %45 = vector.extract_strided_slice %14 {offsets = [120, 0], sizes = [8, 16], strides = [1, 1]} : vector<128x16xf32> to vector<8x16xf32>
    %c0_22 = arith.constant 0 : index
    %c240 = arith.constant 240 : index
    %46 = vector.load %arg10[%c0_22, %c240] : memref<8x256xf32, #tpu.memory_space<vmem>>, vector<8x16xf32>
    tpu.vector_store %arg10[%c0_22, %c240], %45 {strides = array<i32>} : memref<8x256xf32, #tpu.memory_space<vmem>>, vector<8x16xf32>,
    %c0_23 = arith.constant 0 : index
    %c0_24 = arith.constant 0 : index
    %47 = vector.load %arg10[%c0_23, %c0_24] : memref<8x256xf32, #tpu.memory_space<vmem>>, vector<8x256xf32>
    %48 = arith.truncf %47 : vector<8x256xf32> to vector<8x256xbf16>
    %c0_25 = arith.constant 0 : index
    %c0_26 = arith.constant 0 : index
    %49 = vector.load %arg4[%c0_25, %c0_26] : memref<256x128xbf16, #tpu.memory_space<vmem>>, vector<256x128xbf16>
    %cst_27 = arith.constant dense<0.000000e+00> : vector<8x128xf32>
    %50 = tpu.matmul %48, %49, %cst_27 {dimension_numbers = #tpu.dot_dimension_numbers<[1], [0], [0], [1], [0, 0, 1, 1], [], []>} : vector<8x256xbf16>, vector<256x128xbf16>, vector<8x128xf32> -> vector<8x128xf32>
    %c0_28 = arith.constant 0 : index
    %c0_29 = arith.constant 0 : index
    %51 = vector.load %arg6[%c0_28, %c0_29] : memref<1x128xf32, #tpu.memory_space<vmem>>, vector<1x128xf32>
    %52 = vector.broadcast %51 : vector<1x128xf32> to vector<8x128xf32>
    %53 = arith.addf %50, %52 : vector<8x128xf32>
    %cst_30 = arith.constant 0.000000e+00 : f32
    %54 = vector.broadcast %cst_30 : f32 to vector<32x128xf32>
    %c0_31 = arith.constant 0 : index
    %c0_32 = arith.constant 0 : index
    %55 = vector.load %arg11[%c0_31, %c0_32] : memref<32x128xf32, #tpu.memory_space<vmem>>, vector<32x128xf32>
    tpu.vector_store %arg11[%c0_31, %c0_32], %54 {strides = array<i32>} : memref<32x128xf32, #tpu.memory_space<vmem>>, vector<32x128xf32>,
    %56 = vector.extract_strided_slice %53 {offsets = [0, 0], sizes = [2, 128], strides = [1, 1]} : vector<8x128xf32> to vector<2x128xf32>
    %c0_33 = arith.constant 0 : index
    %c0_34 = arith.constant 0 : index
    %57 = vector.load %arg11[%c0_33, %c0_34] : memref<32x128xf32, #tpu.memory_space<vmem>>, vector<2x128xf32>
    tpu.vector_store %arg11[%c0_33, %c0_34], %56 {strides = array<i32>} : memref<32x128xf32, #tpu.memory_space<vmem>>, vector<2x128xf32>,
    %58 = vector.extract_strided_slice %53 {offsets = [2, 0], sizes = [2, 128], strides = [1, 1]} : vector<8x128xf32> to vector<2x128xf32>
    %c8 = arith.constant 8 : index
    %c0_35 = arith.constant 0 : index
    %59 = vector.load %arg11[%c8, %c0_35] : memref<32x128xf32, #tpu.memory_space<vmem>>, vector<2x128xf32>
    tpu.vector_store %arg11[%c8, %c0_35], %58 {strides = array<i32>} : memref<32x128xf32, #tpu.memory_space<vmem>>, vector<2x128xf32>,
    %60 = vector.extract_strided_slice %53 {offsets = [4, 0], sizes = [2, 128], strides = [1, 1]} : vector<8x128xf32> to vector<2x128xf32>
    %c16_36 = arith.constant 16 : index
    %c0_37 = arith.constant 0 : index
    %61 = vector.load %arg11[%c16_36, %c0_37] : memref<32x128xf32, #tpu.memory_space<vmem>>, vector<2x128xf32>
    tpu.vector_store %arg11[%c16_36, %c0_37], %60 {strides = array<i32>} : memref<32x128xf32, #tpu.memory_space<vmem>>, vector<2x128xf32>,
    %62 = vector.extract_strided_slice %53 {offsets = [6, 0], sizes = [2, 128], strides = [1, 1]} : vector<8x128xf32> to vector<2x128xf32>
    %c24 = arith.constant 24 : index
    %c0_38 = arith.constant 0 : index
    %63 = vector.load %arg11[%c24, %c0_38] : memref<32x128xf32, #tpu.memory_space<vmem>>, vector<2x128xf32>
    tpu.vector_store %arg11[%c24, %c0_38], %62 {strides = array<i32>} : memref<32x128xf32, #tpu.memory_space<vmem>>, vector<2x128xf32>,
    %c0_39 = arith.constant 0 : index
    %c0_40 = arith.constant 0 : index
    %64 = vector.load %arg5[%c0_39, %c0_40] : memref<32x128xbf16, #tpu.memory_space<vmem>>, vector<32x128xbf16>
    %cst_41 = arith.constant 0.000000e+00 : bf16
    %65 = vector.broadcast %cst_41 : bf16 to vector<8x32xbf16>
    %cst_42 = arith.constant 0.000000e+00 : f32
    %66 = vector.broadcast %cst_42 : f32 to vector<8x32xf32>
    %c0_43 = arith.constant 0 : index
    %c0_44 = arith.constant 0 : index
    %67 = vector.load %arg11[%c0_43, %c0_44] : memref<32x128xf32, #tpu.memory_space<vmem>>, vector<8x128xf32>
    %cst_45 = arith.constant dense<0.000000e+00> : vector<8x128xf32>
    %68 = tpu.matmul %65, %64, %cst_45 {dimension_numbers = #tpu.dot_dimension_numbers<[1], [0], [0], [1], [0, 0, 1, 1], [], []>} : vector<8x32xbf16>, vector<32x128xbf16>, vector<8x128xf32> -> vector<8x128xf32>
    %69 = arith.addf %67, %68 : vector<8x128xf32>
    %70 = vector.extract_strided_slice %69 {offsets = [0, 0], sizes = [8, 96], strides = [1, 1]} : vector<8x128xf32> to vector<8x96xf32>
    %71 = arith.negf %70 : vector<8x96xf32>
    %72 = math.exp %71 : vector<8x96xf32>
    %cst_46 = arith.constant 1.000000e+00 : f32
    %73 = vector.broadcast %cst_46 : f32 to vector<8x96xf32>
    %74 = arith.addf %73, %72 : vector<8x96xf32>
    %75 = arith.divf %73, %74 : vector<8x96xf32>
    %76 = vector.extract_strided_slice %69 {offsets = [0, 96], sizes = [8, 32], strides = [1, 1]} : vector<8x128xf32> to vector<8x32xf32>
    %77 = math.tanh %76 : vector<8x32xf32>
    %78 = vector.extract_strided_slice %75 {offsets = [0, 32], sizes = [8, 32], strides = [1, 1]} : vector<8x96xf32> to vector<8x32xf32>
    %79 = arith.mulf %78, %66 : vector<8x32xf32>
    %80 = vector.extract_strided_slice %75 {offsets = [0, 0], sizes = [8, 32], strides = [1, 1]} : vector<8x96xf32> to vector<8x32xf32>
    %81 = arith.mulf %80, %77 : vector<8x32xf32>
    %82 = arith.addf %79, %81 : vector<8x32xf32>
    %83 = vector.extract_strided_slice %75 {offsets = [0, 64], sizes = [8, 32], strides = [1, 1]} : vector<8x96xf32> to vector<8x32xf32>
    %84 = math.tanh %82 : vector<8x32xf32>
    %85 = arith.mulf %83, %84 : vector<8x32xf32>
    %86 = arith.truncf %85 : vector<8x32xf32> to vector<8x32xbf16>
    %c8_47 = arith.constant 8 : index
    %c0_48 = arith.constant 0 : index
    %87 = vector.load %arg11[%c8_47, %c0_48] : memref<32x128xf32, #tpu.memory_space<vmem>>, vector<8x128xf32>
    %cst_49 = arith.constant dense<0.000000e+00> : vector<8x128xf32>
    %88 = tpu.matmul %86, %64, %cst_49 {dimension_numbers = #tpu.dot_dimension_numbers<[1], [0], [0], [1], [0, 0, 1, 1], [], []>} : vector<8x32xbf16>, vector<32x128xbf16>, vector<8x128xf32> -> vector<8x128xf32>
    %89 = arith.addf %87, %88 : vector<8x128xf32>
    %90 = vector.extract_strided_slice %89 {offsets = [0, 0], sizes = [8, 96], strides = [1, 1]} : vector<8x128xf32> to vector<8x96xf32>
    %91 = arith.negf %90 : vector<8x96xf32>
    %92 = math.exp %91 : vector<8x96xf32>
    %cst_50 = arith.constant 1.000000e+00 : f32
    %93 = vector.broadcast %cst_50 : f32 to vector<8x96xf32>
    %94 = arith.addf %93, %92 : vector<8x96xf32>
    %95 = arith.divf %93, %94 : vector<8x96xf32>
    %96 = vector.extract_strided_slice %89 {offsets = [0, 96], sizes = [8, 32], strides = [1, 1]} : vector<8x128xf32> to vector<8x32xf32>
    %97 = math.tanh %96 : vector<8x32xf32>
    %98 = vector.extract_strided_slice %95 {offsets = [0, 32], sizes = [8, 32], strides = [1, 1]} : vector<8x96xf32> to vector<8x32xf32>
    %99 = arith.mulf %98, %82 : vector<8x32xf32>
    %100 = vector.extract_strided_slice %95 {offsets = [0, 0], sizes = [8, 32], strides = [1, 1]} : vector<8x96xf32> to vector<8x32xf32>
    %101 = arith.mulf %100, %97 : vector<8x32xf32>
    %102 = arith.addf %99, %101 : vector<8x32xf32>
    %103 = vector.extract_strided_slice %95 {offsets = [0, 64], sizes = [8, 32], strides = [1, 1]} : vector<8x96xf32> to vector<8x32xf32>
    %104 = math.tanh %102 : vector<8x32xf32>
    %105 = arith.mulf %103, %104 : vector<8x32xf32>
    %106 = arith.truncf %105 : vector<8x32xf32> to vector<8x32xbf16>
    %c16_51 = arith.constant 16 : index
    %c0_52 = arith.constant 0 : index
    %107 = vector.load %arg11[%c16_51, %c0_52] : memref<32x128xf32, #tpu.memory_space<vmem>>, vector<8x128xf32>
    %cst_53 = arith.constant dense<0.000000e+00> : vector<8x128xf32>
    %108 = tpu.matmul %106, %64, %cst_53 {dimension_numbers = #tpu.dot_dimension_numbers<[1], [0], [0], [1], [0, 0, 1, 1], [], []>} : vector<8x32xbf16>, vector<32x128xbf16>, vector<8x128xf32> -> vector<8x128xf32>
    %109 = arith.addf %107, %108 : vector<8x128xf32>
    %110 = vector.extract_strided_slice %109 {offsets = [0, 0], sizes = [8, 96], strides = [1, 1]} : vector<8x128xf32> to vector<8x96xf32>
    %111 = arith.negf %110 : vector<8x96xf32>
    %112 = math.exp %111 : vector<8x96xf32>
    %cst_54 = arith.constant 1.000000e+00 : f32
    %113 = vector.broadcast %cst_54 : f32 to vector<8x96xf32>
    %114 = arith.addf %113, %112 : vector<8x96xf32>
    %115 = arith.divf %113, %114 : vector<8x96xf32>
    %116 = vector.extract_strided_slice %109 {offsets = [0, 96], sizes = [8, 32], strides = [1, 1]} : vector<8x128xf32> to vector<8x32xf32>
    %117 = math.tanh %116 : vector<8x32xf32>
    %118 = vector.extract_strided_slice %115 {offsets = [0, 32], sizes = [8, 32], strides = [1, 1]} : vector<8x96xf32> to vector<8x32xf32>
    %119 = arith.mulf %118, %102 : vector<8x32xf32>
    %120 = vector.extract_strided_slice %115 {offsets = [0, 0], sizes = [8, 32], strides = [1, 1]} : vector<8x96xf32> to vector<8x32xf32>
    %121 = arith.mulf %120, %117 : vector<8x32xf32>
    %122 = arith.addf %119, %121 : vector<8x32xf32>
    %123 = vector.extract_strided_slice %115 {offsets = [0, 64], sizes = [8, 32], strides = [1, 1]} : vector<8x96xf32> to vector<8x32xf32>
    %124 = math.tanh %122 : vector<8x32xf32>
    %125 = arith.mulf %123, %124 : vector<8x32xf32>
    %126 = arith.truncf %125 : vector<8x32xf32> to vector<8x32xbf16>
    %c24_55 = arith.constant 24 : index
    %c0_56 = arith.constant 0 : index
    %127 = vector.load %arg11[%c24_55, %c0_56] : memref<32x128xf32, #tpu.memory_space<vmem>>, vector<8x128xf32>
    %cst_57 = arith.constant dense<0.000000e+00> : vector<8x128xf32>
    %128 = tpu.matmul %126, %64, %cst_57 {dimension_numbers = #tpu.dot_dimension_numbers<[1], [0], [0], [1], [0, 0, 1, 1], [], []>} : vector<8x32xbf16>, vector<32x128xbf16>, vector<8x128xf32> -> vector<8x128xf32>
    %129 = arith.addf %127, %128 : vector<8x128xf32>
    %130 = vector.extract_strided_slice %129 {offsets = [0, 0], sizes = [8, 96], strides = [1, 1]} : vector<8x128xf32> to vector<8x96xf32>
    %131 = arith.negf %130 : vector<8x96xf32>
    %132 = math.exp %131 : vector<8x96xf32>
    %cst_58 = arith.constant 1.000000e+00 : f32
    %133 = vector.broadcast %cst_58 : f32 to vector<8x96xf32>
    %134 = arith.addf %133, %132 : vector<8x96xf32>
    %135 = arith.divf %133, %134 : vector<8x96xf32>
    %136 = vector.extract_strided_slice %129 {offsets = [0, 96], sizes = [8, 32], strides = [1, 1]} : vector<8x128xf32> to vector<8x32xf32>
    %137 = math.tanh %136 : vector<8x32xf32>
    %138 = vector.extract_strided_slice %135 {offsets = [0, 32], sizes = [8, 32], strides = [1, 1]} : vector<8x96xf32> to vector<8x32xf32>
    %139 = arith.mulf %138, %122 : vector<8x32xf32>
    %140 = vector.extract_strided_slice %135 {offsets = [0, 0], sizes = [8, 32], strides = [1, 1]} : vector<8x96xf32> to vector<8x32xf32>
    %141 = arith.mulf %140, %137 : vector<8x32xf32>
    %142 = arith.addf %139, %141 : vector<8x32xf32>
    %143 = vector.extract_strided_slice %135 {offsets = [0, 64], sizes = [8, 32], strides = [1, 1]} : vector<8x96xf32> to vector<8x32xf32>
    %144 = math.tanh %142 : vector<8x32xf32>
    %145 = arith.mulf %143, %144 : vector<8x32xf32>
    %146 = vector.extract_strided_slice %145 {offsets = [0, 0], sizes = [2, 32], strides = [1, 1]} : vector<8x32xf32> to vector<2x32xf32>
    %c0_59 = arith.constant 0 : index
    %c0_60 = arith.constant 0 : index
    %147 = vector.load %arg7[%c0_59, %c0_60] : memref<32x2xf32, #tpu.memory_space<vmem>>, vector<32x2xf32>
    %cst_61 = arith.constant dense<0.000000e+00> : vector<2x2xf32>
    %148 = tpu.matmul %146, %147, %cst_61 {dimension_numbers = #tpu.dot_dimension_numbers<[1], [0], [0], [1], [0, 0, 1, 1], [], []>} : vector<2x32xf32>, vector<32x2xf32>, vector<2x2xf32> -> vector<2x2xf32>
    %c0_62 = arith.constant 0 : index
    %c0_63 = arith.constant 0 : index
    %149 = vector.load %arg8[%c0_62, %c0_63] : memref<1x2xf32, #tpu.memory_space<vmem>>, vector<1x2xf32>
    %150 = vector.broadcast %149 : vector<1x2xf32> to vector<2x2xf32>
    %151 = arith.addf %148, %150 : vector<2x2xf32>
    %c0_64 = arith.constant 0 : index
    %c0_65 = arith.constant 0 : index
    %152 = vector.load %arg9[%c0_64, %c0_65] : memref<2x2xf32, #tpu.memory_space<vmem>>, vector<2x2xf32>
    tpu.vector_store %arg9[%c0_64, %c0_65], %151 {strides = array<i32>} : memref<2x2xf32, #tpu.memory_space<vmem>>, vector<2x2xf32>,
    return
  }
  func.func @transform_0(%arg0: i32) -> (i32, i32) {
    %c0_i32 = arith.constant 0 : i32
    %c0_i32_0 = arith.constant 0 : i32
    %c0_i32_1 = arith.constant 0 : i32
    return %c0_i32, %c0_i32_0 : i32, i32
  }
  func.func @transform_1(%arg0: i32) -> (i32, i32) {
    %c0_i32 = arith.constant 0 : i32
    %c0_i32_0 = arith.constant 0 : i32
    %c0_i32_1 = arith.constant 0 : i32
    return %c0_i32, %c0_i32_0 : i32, i32
  }
  func.func @transform_2(%arg0: i32) -> (i32, i32) {
    %c0_i32 = arith.constant 0 : i32
    %c0_i32_0 = arith.constant 0 : i32
    %c0_i32_1 = arith.constant 0 : i32
    return %c0_i32, %c0_i32_0 : i32, i32
  }
  func.func @transform_3(%arg0: i32) -> (i32, i32) {
    %c0_i32 = arith.constant 0 : i32
    %c0_i32_0 = arith.constant 0 : i32
    %c0_i32_1 = arith.constant 0 : i32
    return %c0_i32, %c0_i32_0 : i32, i32
  }
  func.func @transform_4(%arg0: i32) -> (i32, i32) {
    %c0_i32 = arith.constant 0 : i32
    %c0_i32_0 = arith.constant 0 : i32
    %c0_i32_1 = arith.constant 0 : i32
    return %c0_i32, %c0_i32_0 : i32, i32
  }
  func.func @transform_5(%arg0: i32) -> (i32, i32) {
    %c0_i32 = arith.constant 0 : i32
    %c0_i32_0 = arith.constant 0 : i32
    %c0_i32_1 = arith.constant 0 : i32
    return %c0_i32, %c0_i32_0 : i32, i32
  }
  func.func @transform_6(%arg0: i32) -> (i32, i32) {
    %c0_i32 = arith.constant 0 : i32
    %c0_i32_0 = arith.constant 0 : i32
    %c0_i32_1 = arith.constant 0 : i32
    return %c0_i32, %c0_i32_0 : i32, i32
  }
  func.func @transform_7(%arg0: i32) -> (i32, i32) {
    %c0_i32 = arith.constant 0 : i32
    %c0_i32_0 = arith.constant 0 : i32
    %c0_i32_1 = arith.constant 0 : i32
    return %c0_i32, %c0_i32_0 : i32, i32
  }
  func.func @transform_8(%arg0: i32) -> (i32, i32) {
    %c0_i32 = arith.constant 0 : i32
    %c0_i32_0 = arith.constant 0 : i32
    %c0_i32_1 = arith.constant 0 : i32
    return %c0_i32, %c0_i32_0 : i32, i32
  }
}

</mosaic_0001>

<llo_original>
// kernel: mri_sequence_net_forward.2
$region0: #{mri_sequence_net_forward.2}
  #allocation0 [shape = 'u32[]', space=smem, size = 0x4, offset = 0x4, fixed_abs, tag = 'smem constant byte address 0x4 - core index']
  #allocation1 [shape = 'u32[144,128]{1,0:T(1,128)}', space=vmem, size = 0x12000, scoped, tag = 'internal scratch']
  %s0 = inlined_call_operand.vmem [shape: f32[4,9,512], index: 0, kind: input, shape index: {}]
  %s1 = inlined_call_operand.vmem [shape: f32[8,9], index: 1, kind: input, shape index: {}]
  %s2 = inlined_call_operand.vmem [shape: f32[8,1], index: 2, kind: input, shape index: {}]
  %s3 = inlined_call_operand.vmem [shape: bf16[8,512], index: 3, kind: output, shape index: {}]
  %s4 = sld [smem:[#allocation0]]
  $region68: #{mri_sequence_net_forward.2} parent=0
    _
  %s6 = ssub.s32 1, %s4
  %s7 = scalar_select 0, %s6, %s4
  $region1: #{mri_sequence_net_forward.2} parent=0
    #allocation2 [shape = 'u8[131072]{0}', space=vmem, size = 0x20000, scoped, tag = 'input window, operand 0']
    loop: start=0, step=1, limit=4
    $region2: #{mri_sequence_net_forward.2} parent=1 // loop_pre_header
      _
    $region3: #{mri_sequence_net_forward.2} parent=1 // loop_header
      %s9 = sphi 0, %s13
      %p10 = scmp.ge.s32.totalorder %s9, 4
      %s19 = sphi 0, %s21
      %s22 = sphi 0, %s19
      %s23 = sphi 0, %s22
      %s39 = sphi 0, %s23
      %s43 = sphi 0, %s43
      %s45 = sphi 0, %s43
      %s46 = sphi 0, %s45
      %s60 = sphi 0, %s46
      %s64 = sphi 0, %s64
      %s66 = sphi 0, %s64
      %s67 = sphi 0, %s66
      %s81 = sphi 0, %s67
      %s87 = sphi 0, %s89
      %s90 = sphi 0, %s87
      %s91 = sphi 0, %s90
      %s107 = sphi 0, %s91
    $region4: #{mri_sequence_net_forward.2} parent=1 // loop_header_branch
      %12 = sbr.rel (%p10) target = $region8
    $region5: #{mri_sequence_net_forward.2} parent=1 // loop_body
      %s14 = ssub.s32 %s9, 1
      %s15 = ssub.s32 %s9, 2
      %s16 = sadd.s32 %s9, 1
      %s17 = ssub.s32 %s9, %s16
      %p18 = scmp.eq.s32.totalorder %s17, 0
      %s20 = sadd.s32 %s19, 1
      %s21 = scalar_select %p18, %s19, %s20
      %p24 = pneg %p18
      %p25 = scmp.eq.s32.totalorder %s9, 1
      %p26 = por %p24, %p25
      %p27 = scmp.ne.s32.totalorder %s19, %s22
      %p28 = scmp.eq.s32.totalorder %s9, 0
      %p29 = por %p27, %p28
      %p30 = scmp.ne.s32.totalorder %s19, %s22
      %p31 = scmp.eq.s32.totalorder %s14, 1
      %p32 = por %p30, %p31
      %p33 = scmp.ne.s32.totalorder %s22, %s23
      %p34 = scmp.eq.s32.totalorder %s14, 0
      %p35 = por %p33, %p34
      %p36 = scmp.ne.s32.totalorder %s22, %s23
      %p37 = scmp.eq.s32.totalorder %s15, 1
      %p38 = por %p36, %p37
      %p40 = scmp.ne.s32.totalorder %s23, %s39
      %p41 = scmp.eq.s32.totalorder %s15, 0
      %p42 = por %p40, %p41
      %s44 = sadd.s32 %s43, 1
      %p47 = scmp.eq.s32.totalorder %s9, 1
      %p48 = scmp.ne.s32.totalorder %s43, %s45
      %p49 = scmp.eq.s32.totalorder %s9, 0
      %p50 = por %p48, %p49
      %p51 = scmp.ne.s32.totalorder %s43, %s45
      %p52 = scmp.eq.s32.totalorder %s14, 1
      %p53 = por %p51, %p52
      %p54 = scmp.ne.s32.totalorder %s45, %s46
      %p55 = scmp.eq.s32.totalorder %s14, 0
      %p56 = por %p54, %p55
      %p57 = scmp.ne.s32.totalorder %s45, %s46
      %p58 = scmp.eq.s32.totalorder %s15, 1
      %p59 = por %p57, %p58
      %p61 = scmp.ne.s32.totalorder %s46, %s60
      %p62 = scmp.eq.s32.totalorder %s15, 0
      %p63 = por %p61, %p62
      %s65 = sadd.s32 %s64, 1
      %p68 = scmp.eq.s32.totalorder %s9, 1
      %p69 = scmp.ne.s32.totalorder %s64, %s66
      %p70 = scmp.eq.s32.totalorder %s9, 0
      %p71 = por %p69, %p70
      %p72 = scmp.ne.s32.totalorder %s64, %s66
      %p73 = scmp.eq.s32.totalorder %s14, 1
      %p74 = por %p72, %p73
      %p75 = scmp.ne.s32.totalorder %s66, %s67
      %p76 = scmp.eq.s32.totalorder %s14, 0
      %p77 = por %p75, %p76
      %p78 = scmp.ne.s32.totalorder %s66, %s67
      %p79 = scmp.eq.s32.totalorder %s15, 1
      %p80 = por %p78, %p79
      %p82 = scmp.ne.s32.totalorder %s67, %s81
      %p83 = scmp.eq.s32.totalorder %s15, 0
      %p84 = por %p82, %p83
      %s85 = ssub.s32 %s9, %s16
      %p86 = scmp.eq.s32.totalorder %s85, 0
      %s88 = sadd.s32 %s87, 1
      %s89 = scalar_select %p86, %s87, %s88
      %p92 = pneg %p86
      %p93 = scmp.eq.s32.totalorder %s9, 1
      %p94 = por %p92, %p93
      %p95 = scmp.ne.s32.totalorder %s87, %s90
      %p96 = scmp.eq.s32.totalorder %s9, 0
      %p97 = por %p95, %p96
      %p98 = scmp.ne.s32.totalorder %s87, %s90
      %p99 = scmp.eq.s32.totalorder %s14, 1
      %p100 = por %p98, %p99
      %p101 = scmp.ne.s32.totalorder %s90, %s91
      %p102 = scmp.eq.s32.totalorder %s14, 0
      %p103 = por %p101, %p102
      %p104 = scmp.ne.s32.totalorder %s90, %s91
      %p105 = scmp.eq.s32.totalorder %s15, 1
      %p106 = por %p104, %p105
      %p108 = scmp.ne.s32.totalorder %s91, %s107
      %p109 = scmp.eq.s32.totalorder %s15, 0
      %p110 = por %p108, %p109
      %p111 = scmp.le.s32.totalorder 1, %s9
      %p112 = scmp.lt.s32.totalorder %s9, 3
      %p113 = pnand %p111, %p112
      %p114 = pneg %p113
      // Predicated region
      $region9: #{mri_sequence_net_forward.2} parent=5 // pred_check
        _
      $region10: #{mri_sequence_net_forward.2} parent=5 // pred_check_branch
        %116 = sbr.rel (%p113) target = $region12
      $region11: #{mri_sequence_net_forward.2} parent=5 // pred_region
        %s117 = ssub.s32 %s9, 1
        // Predicated region
        $region13: #{mri_sequence_net_forward.2} parent=11 // pred_check
          %p118 = pneg %p56
        $region14: #{mri_sequence_net_forward.2} parent=11 // pred_check_branch
          %120 = sbr.rel (%p118) target = $region16
        $region15: #{mri_sequence_net_forward.2} parent=11 // pred_region
          _
        $region16: #{mri_sequence_net_forward.2} parent=11 // pred_fallthru
          _
        // Predicated region
        $region17: #{mri_sequence_net_forward.2} parent=11 // pred_check
          %p121 = pneg %p77
        $region18: #{mri_sequence_net_forward.2} parent=11 // pred_check_branch
          %123 = sbr.rel (%p121) target = $region20
        $region19: #{mri_sequence_net_forward.2} parent=11 // pred_region
          _
        $region20: #{mri_sequence_net_forward.2} parent=11 // pred_fallthru
          _
      $region12: #{mri_sequence_net_forward.2} parent=5 // pred_fallthru
        _
      %p124 = scmp.lt.s32.totalorder %s9, 2
      // Predicated region
      $region21: #{mri_sequence_net_forward.2} parent=5 // pred_check
        %p125 = pneg %p124
      $region22: #{mri_sequence_net_forward.2} parent=5 // pred_check_branch
        %127 = sbr.rel (%p125) target = $region24
      $region23: #{mri_sequence_net_forward.2} parent=5 // pred_region
        // Predicated region
        $region25: #{mri_sequence_net_forward.2} parent=23 // pred_check
          %p128 = pneg %p29
        $region26: #{mri_sequence_net_forward.2} parent=23 // pred_check_branch
          %130 = sbr.rel (%p128) target = $region28
        $region27: #{mri_sequence_net_forward.2} parent=23 // pred_region
          %s131 = sand.u32 %s19, 1
          %s132 = sand.u32 %s19, 1
          %s133 = smul.addr %s132, 128
          %s134 = scalar_lea.vmem [#allocation2], %s133
          %s135 = smul.u32 2, %s9
          %s136 = smul.addr %s135, 8
          %s137 = scalar_lea.vmem %s0, %s136
          // Predicated region
          $region29: #{mri_sequence_net_forward.2} parent=27 // pred_check
            _
          $region30: #{mri_sequence_net_forward.2} parent=27 // pred_check_branch
            %139 = sbr.rel (0) target = $region32
          $region31: #{mri_sequence_net_forward.2} parent=27 // pred_region
            // Predicated region
            $region33: #{mri_sequence_net_forward.2} parent=31 // pred_check
              _
            $region34: #{mri_sequence_net_forward.2} parent=31 // pred_check_branch
              %141 = sbr.rel (0) target = $region36
            $region35: #{mri_sequence_net_forward.2} parent=31 // pred_region
              loop: start=0, step=1, limit=1
              $region37: #{mri_sequence_net_forward.2} parent=35 // loop_pre_header
                _
              $region38: #{mri_sequence_net_forward.2} parent=35 // loop_header
                %s143 = sphi 0, %s147
                %p144 = scmp.ge.s32.totalorder %s143, 1
                %s148 = sphi %s137, %s137
                %s149 = sphi %s134, %s134
              $region39: #{mri_sequence_net_forward.2} parent=35 // loop_header_branch
                %146 = sbr.rel (%p144) target = $region43
              $region40: #{mri_sequence_net_forward.2} parent=35 // loop_body
                %v150 = vld [vmem:[%s148] sm:$0xff]
                %151 = vst [vmem:[%s149] sm:$0xff] %v150
                %v152 = vld [vmem:[%s148 + $0x8] sm:$0xff]
                %153 = vst [vmem:[%s149 + $0x8] sm:$0xff] %v152
                %v154 = vld [vmem:[%s148 + $0x20] sm:$0xff]
                %155 = vst [vmem:[%s149 + $0x10] sm:$0xff] %v154
                %v156 = vld [vmem:[%s148 + $0x28] sm:$0xff]
                %157 = vst [vmem:[%s149 + $0x18] sm:$0xff] %v156
                %v158 = vld [vmem:[%s148 + $0x40] sm:$0xff]
                %159 = vst [vmem:[%s149 + $0x20] sm:$0xff] %v158
                %v160 = vld [vmem:[%s148 + $0x48] sm:$0xff]
                %161 = vst [vmem:[%s149 + $0x28] sm:$0xff] %v160
                %v162 = vld [vmem:[%s148 + $0x60] sm:$0xff]
                %163 = vst [vmem:[%s149 + $0x30] sm:$0xff] %v162
                %v164 = vld [vmem:[%s148 + $0x68] sm:$0xff]
                %165 = vst [vmem:[%s149 + $0x38] sm:$0xff] %v164
                %v166 = vld [vmem:[%s148 + $0x80] sm:$0xff]
                %167 = vst [vmem:[%s149 + $0x40] sm:$0xff] %v166
                %v168 = vld [vmem:[%s148 + $0x88] sm:$0xff]
                %169 = vst [vmem:[%s149 + $0x48] sm:$0xff] %v168
                %v170 = vld [vmem:[%s148 + $0xa0] sm:$0xff]
                %171 = vst [vmem:[%s149 + $0x50] sm:$0xff] %v170
                %v172 = vld [vmem:[%s148 + $0xa8] sm:$0xff]
                %173 = vst [vmem:[%s149 + $0x58] sm:$0xff] %v172
                %v174 = vld [vmem:[%s148 + $0xc0] sm:$0xff]
                %175 = vst [vmem:[%s149 + $0x60] sm:$0xff] %v174
                %v176 = vld [vmem:[%s148 + $0xc8] sm:$0xff]
                %177 = vst [vmem:[%s149 + $0x68] sm:$0xff] %v176
                %v178 = vld [vmem:[%s148 + $0xe0] sm:$0xff]
                %179 = vst [vmem:[%s149 + $0x70] sm:$0xff] %v178
                %v180 = vld [vmem:[%s148 + $0xe8] sm:$0xff]
                %181 = vst [vmem:[%s149 + $0x78] sm:$0xff] %v180
              $region41: #{mri_sequence_net_forward.2} parent=35 // loop_footer
                %s147 = sadd.s32 1, %s143
              $region42: #{mri_sequence_net_forward.2} parent=35 // loop_footer_branch
                %142 = sbr.rel target = $region38
              $region43: #{mri_sequence_net_forward.2} parent=35 // loop_exit
                _
            $region36: #{mri_sequence_net_forward.2} parent=31 // pred_fallthru
              _
            // Predicated region
            $region44: #{mri_sequence_net_forward.2} parent=31 // pred_check
              _
            $region45: #{mri_sequence_net_forward.2} parent=31 // pred_check_branch
              %183 = sbr.rel target = $region47
            $region46: #{mri_sequence_net_forward.2} parent=31 // pred_region
              _
            $region47: #{mri_sequence_net_forward.2} parent=31 // pred_fallthru
              _
          $region32: #{mri_sequence_net_forward.2} parent=27 // pred_fallthru
            _
          %184 = vnop
        $region28: #{mri_sequence_net_forward.2} parent=23 // pred_fallthru
          _
      $region24: #{mri_sequence_net_forward.2} parent=5 // pred_fallthru
        _
      %p185 = scmp.le.s32.totalorder 1, %s9
      %p186 = scmp.lt.s32.totalorder %s9, 3
      %p187 = pnand %p185, %p186
      %p188 = pneg %p187
      // Predicated region
      $region48: #{mri_sequence_net_forward.2} parent=5 // pred_check
        _
      $region49: #{mri_sequence_net_forward.2} parent=5 // pred_check_branch
        %190 = sbr.rel (%p187) target = $region51
      $region50: #{mri_sequence_net_forward.2} parent=5 // pred_region
        %s191 = ssub.s32 %s9, 1
        %s192 = sand.u32 %s22, 1
        %s193 = sand.u32 %s22, 1
        %s194 = smul.addr %s193, 128
        %s195 = scalar_lea.vmem [#allocation2], %s194
        // Predicated region
        $region52: #{mri_sequence_net_forward.2} parent=50 // pred_check
          %p196 = pneg %p35
        $region53: #{mri_sequence_net_forward.2} parent=50 // pred_check_branch
          %198 = sbr.rel (%p196) target = $region55
        $region54: #{mri_sequence_net_forward.2} parent=50 // pred_region
          _
        $region55: #{mri_sequence_net_forward.2} parent=50 // pred_fallthru
          _
        %s199 = sand.u32 %s22, 1
        %s200 = sand.u32 %s22, 1
        %s201 = smul.addr %s200, 128
        %s202 = scalar_lea.vmem [#allocation2], %s201
        %p203 = pneg %p35
        %p204 = pneg %p32
        %p205 = pneg %p56
        %p206 = pneg %p53
        %p207 = pneg %p77
        %p208 = pneg %p74
        %p209 = pneg %p103
        %p210 = pneg %p100
        %s211 = smul.u32 2, %s14
        %p212 = scmp.lt.s32.totalorder %s211, 3
        %s213 = scalar_select %p212, %s211, 3
        %s214 = smul.addr %s213, 4
        %s215 = scalar_lea.vmem %s3, %s214
        %s216 = smul.u32 2, %s14
        %s217 = smul.u32 2, %s14
        %p218 = scmp.lt.s32.totalorder %s217, 3
        %s219 = scalar_select %p218, %s217, 3
        %s220 = smul.addr %s219, 4
        %s221 = scalar_lea.vmem %s3, %s220
        %s222 = smul.u32 2, %s14
        %v223 = vld [vmem:[%s1] sm:$0xff]
        %v224 = vld [vmem:[%s2] sm:$0xff]
        %v225 = vld [vmem:[%s195] sm:$0xff]
        %v226 = vld [vmem:[%s195 + $0x8] sm:$0xff]
        %v227 = vld [vmem:[%s195 + $0x10] sm:$0x1]
        %v228 = vld [vmem:[%s195 + $0x18] sm:$0x1]
        %230 = vset.pattern.permute.xlu0 0
        %231 = vperm.xlu0 %230, %v223
        %v232 = vpop.permute.xlu0 %231
        %v234 = vlaneseq
        %v235 = vshrl.u32 %v234, 7
        %v236 = vsub.s32 0, %v235
        %v237 = vrot.slane %v225, %v236
        %v238 = vlaneseq
        %v239 = vshrl.u32 %v238, 7
        %v240 = vsub.s32 0, %v239
        %v241 = vrot.slane %v226, %v240
        %v242 = vmul.f32 %v232, %v237
        %v243 = vmul.f32 %v232, %v241
        %244 = vset.pattern.permute.xlu0 1
        %245 = vperm.xlu0 %244, %v223
        %v246 = vpop.permute.xlu0 %245
        %v248 = vlaneseq
        %v249 = vshrl.u32 %v248, 7
        %v250 = vsub.s32 1, %v249
        %v251 = vrot.slane %v225, %v250
        %v252 = vlaneseq
        %v253 = vshrl.u32 %v252, 7
        %v254 = vsub.s32 1, %v253
        %v255 = vrot.slane %v226, %v254
        %v256 = vmul.f32 %v246, %v251
        %v257 = vmul.f32 %v246, %v255
        %v258 = vadd.f32 %v242, %v256
        %v259 = vadd.f32 %v243, %v257
        %260 = vset.pattern.permute.xlu0 2
        %261 = vperm.xlu0 %260, %v223
        %v262 = vpop.permute.xlu0 %261
        %v264 = vlaneseq
        %v265 = vshrl.u32 %v264, 7
        %v266 = vsub.s32 2, %v265
        %v267 = vrot.slane %v225, %v266
        %v268 = vlaneseq
        %v269 = vshrl.u32 %v268, 7
        %v270 = vsub.s32 2, %v269
        %v271 = vrot.slane %v226, %v270
        %v272 = vmul.f32 %v262, %v267
        %v273 = vmul.f32 %v262, %v271
        %v274 = vadd.f32 %v258, %v272
        %v275 = vadd.f32 %v259, %v273
        %276 = vset.pattern.permute.xlu0 3
        %277 = vperm.xlu0 %276, %v223
        %v278 = vpop.permute.xlu0 %277
        %v280 = vlaneseq
        %v281 = vshrl.u32 %v280, 7
        %v282 = vsub.s32 3, %v281
        %v283 = vrot.slane %v225, %v282
        %v284 = vlaneseq
        %v285 = vshrl.u32 %v284, 7
        %v286 = vsub.s32 3, %v285
        %v287 = vrot.slane %v226, %v286
        %v288 = vmul.f32 %v278, %v283
        %v289 = vmul.f32 %v278, %v287
        %v290 = vadd.f32 %v274, %v288
        %v291 = vadd.f32 %v275, %v289
        %292 = vset.pattern.permute.xlu0 4
        %293 = vperm.xlu0 %292, %v223
        %v294 = vpop.permute.xlu0 %293
        %v296 = vlaneseq
        %v297 = vshrl.u32 %v296, 7
        %v298 = vsub.s32 4, %v297
        %v299 = vrot.slane %v225, %v298
        %v300 = vlaneseq
        %v301 = vshrl.u32 %v300, 7
        %v302 = vsub.s32 4, %v301
        %v303 = vrot.slane %v226, %v302
        %v304 = vmul.f32 %v294, %v299
        %v305 = vmul.f32 %v294, %v303
        %v306 = vadd.f32 %v290, %v304
        %v307 = vadd.f32 %v291, %v305
        %308 = vset.pattern.permute.xlu0 5
        %309 = vperm.xlu0 %308, %v223
        %v310 = vpop.permute.xlu0 %309
        %v312 = vlaneseq
        %v313 = vshrl.u32 %v312, 7
        %v314 = vsub.s32 5, %v313
        %v315 = vrot.slane %v225, %v314
        %v316 = vlaneseq
        %v317 = vshrl.u32 %v316, 7
        %v318 = vsub.s32 5, %v317
        %v319 = vrot.slane %v226, %v318
        %v320 = vmul.f32 %v310, %v315
        %v321 = vmul.f32 %v310, %v319
        %v322 = vadd.f32 %v306, %v320
        %v323 = vadd.f32 %v307, %v321
        %324 = vset.pattern.permute.xlu0 6
        %325 = vperm.xlu0 %324, %v223
        %v326 = vpop.permute.xlu0 %325
        %v328 = vlaneseq
        %v329 = vshrl.u32 %v328, 7
        %v330 = vsub.s32 6, %v329
        %v331 = vrot.slane %v225, %v330
        %v332 = vlaneseq
        %v333 = vshrl.u32 %v332, 7
        %v334 = vsub.s32 6, %v333
        %v335 = vrot.slane %v226, %v334
        %v336 = vmul.f32 %v326, %v331
        %v337 = vmul.f32 %v326, %v335
        %v338 = vadd.f32 %v322, %v336
        %v339 = vadd.f32 %v323, %v337
        %340 = vset.pattern.permute.xlu0 7
        %341 = vperm.xlu0 %340, %v223
        %v342 = vpop.permute.xlu0 %341
        %v344 = vlaneseq
        %v345 = vshrl.u32 %v344, 7
        %v346 = vsub.s32 7, %v345
        %v347 = vrot.slane %v225, %v346
        %v348 = vlaneseq
        %v349 = vshrl.u32 %v348, 7
        %v350 = vsub.s32 7, %v349
        %v351 = vrot.slane %v226, %v350
        %v352 = vmul.f32 %v342, %v347
        %v353 = vmul.f32 %v342, %v351
        %v354 = vadd.f32 %v338, %v352
        %v355 = vadd.f32 %v339, %v353
        %356 = vset.pattern.permute.xlu0 8
        %357 = vperm.xlu0 %356, %v223
        %v358 = vpop.permute.xlu0 %357
        %v360 = vlaneseq
        %v361 = vshrl.u32 %v360, 7
        %v362 = vsub.s32 0, %v361
        %v363 = vrot.slane %v227, %v362
        %v364 = vlaneseq
        %v365 = vshrl.u32 %v364, 7
        %v366 = vsub.s32 0, %v365
        %v367 = vrot.slane %v228, %v366
        %v368 = vmul.f32 %v358, %v363
        %v369 = vmul.f32 %v358, %v367
        %v370 = vadd.f32 %v354, %v368
        %v371 = vadd.f32 %v355, %v369
        %373 = vset.pattern.permute.xlu0 0
        %374 = vperm.xlu0 %373, %v224
        %v375 = vpop.permute.xlu0 %374
        %v377 = vadd.f32 %v370, %v375
        %v378 = vadd.f32 %v371, %v375
        %v379 = vmax.f32 %v377, 0.0
        %v380 = vmax.f32 %v378, 0.0
        %s381 = scalar_lea.vmem %s195, 32 [#allocation2]
        %v382 = vld [vmem:[%s381] sm:$0xff]
        %v383 = vld [vmem:[%s381 + $0x8] sm:$0xff]
        %v384 = vld [vmem:[%s381 + $0x10] sm:$0x1]
        %v385 = vld [vmem:[%s381 + $0x18] sm:$0x1]
        %v386 = vlaneseq
        %v387 = vshrl.u32 %v386, 7
        %v388 = vsub.s32 0, %v387
        %v389 = vrot.slane %v382, %v388
        %v390 = vlaneseq
        %v391 = vshrl.u32 %v390, 7
        %v392 = vsub.s32 0, %v391
        %v393 = vrot.slane %v383, %v392
        %v394 = vmul.f32 %v232, %v389
        %v395 = vmul.f32 %v232, %v393
        %v396 = vlaneseq
        %v397 = vshrl.u32 %v396, 7
        %v398 = vsub.s32 1, %v397
        %v399 = vrot.slane %v382, %v398
        %v400 = vlaneseq
        %v401 = vshrl.u32 %v400, 7
        %v402 = vsub.s32 1, %v401
        %v403 = vrot.slane %v383, %v402
        %v404 = vmul.f32 %v246, %v399
        %v405 = vmul.f32 %v246, %v403
        %v406 = vadd.f32 %v394, %v404
        %v407 = vadd.f32 %v395, %v405
        %v408 = vlaneseq
        %v409 = vshrl.u32 %v408, 7
        %v410 = vsub.s32 2, %v409
        %v411 = vrot.slane %v382, %v410
        %v412 = vlaneseq
        %v413 = vshrl.u32 %v412, 7
        %v414 = vsub.s32 2, %v413
        %v415 = vrot.slane %v383, %v414
        %v416 = vmul.f32 %v262, %v411
        %v417 = vmul.f32 %v262, %v415
        %v418 = vadd.f32 %v406, %v416
        %v419 = vadd.f32 %v407, %v417
        %v420 = vlaneseq
        %v421 = vshrl.u32 %v420, 7
        %v422 = vsub.s32 3, %v421
        %v423 = vrot.slane %v382, %v422
        %v424 = vlaneseq
        %v425 = vshrl.u32 %v424, 7
        %v426 = vsub.s32 3, %v425
        %v427 = vrot.slane %v383, %v426
        %v428 = vmul.f32 %v278, %v423
        %v429 = vmul.f32 %v278, %v427
        %v430 = vadd.f32 %v418, %v428
        %v431 = vadd.f32 %v419, %v429
        %v432 = vlaneseq
        %v433 = vshrl.u32 %v432, 7
        %v434 = vsub.s32 4, %v433
        %v435 = vrot.slane %v382, %v434
        %v436 = vlaneseq
        %v437 = vshrl.u32 %v436, 7
        %v438 = vsub.s32 4, %v437
        %v439 = vrot.slane %v383, %v438
        %v440 = vmul.f32 %v294, %v435
        %v441 = vmul.f32 %v294, %v439
        %v442 = vadd.f32 %v430, %v440
        %v443 = vadd.f32 %v431, %v441
        %v444 = vlaneseq
        %v445 = vshrl.u32 %v444, 7
        %v446 = vsub.s32 5, %v445
        %v447 = vrot.slane %v382, %v446
        %v448 = vlaneseq
        %v449 = vshrl.u32 %v448, 7
        %v450 = vsub.s32 5, %v449
        %v451 = vrot.slane %v383, %v450
        %v452 = vmul.f32 %v310, %v447
        %v453 = vmul.f32 %v310, %v451
        %v454 = vadd.f32 %v442, %v452
        %v455 = vadd.f32 %v443, %v453
        %v456 = vlaneseq
        %v457 = vshrl.u32 %v456, 7
        %v458 = vsub.s32 6, %v457
        %v459 = vrot.slane %v382, %v458
        %v460 = vlaneseq
        %v461 = vshrl.u32 %v460, 7
        %v462 = vsub.s32 6, %v461
        %v463 = vrot.slane %v383, %v462
        %v464 = vmul.f32 %v326, %v459
        %v465 = vmul.f32 %v326, %v463
        %v466 = vadd.f32 %v454, %v464
        %v467 = vadd.f32 %v455, %v465
        %v468 = vlaneseq
        %v469 = vshrl.u32 %v468, 7
        %v470 = vsub.s32 7, %v469
        %v471 = vrot.slane %v382, %v470
        %v472 = vlaneseq
        %v473 = vshrl.u32 %v472, 7
        %v474 = vsub.s32 7, %v473
        %v475 = vrot.slane %v383, %v474
        %v476 = vmul.f32 %v342, %v471
        %v477 = vmul.f32 %v342, %v475
        %v478 = vadd.f32 %v466, %v476
        %v479 = vadd.f32 %v467, %v477
        %v480 = vlaneseq
        %v481 = vshrl.u32 %v480, 7
        %v482 = vsub.s32 0, %v481
        %v483 = vrot.slane %v384, %v482
        %v484 = vlaneseq
        %v485 = vshrl.u32 %v484, 7
        %v486 = vsub.s32 0, %v485
        %v487 = vrot.slane %v385, %v486
        %v488 = vmul.f32 %v358, %v483
        %v489 = vmul.f32 %v358, %v487
        %v490 = vadd.f32 %v478, %v488
        %v491 = vadd.f32 %v479, %v489
        %v492 = vadd.f32 %v490, %v375
        %v493 = vadd.f32 %v491, %v375
        %v494 = vmax.f32 %v492, 0.0
        %v495 = vmax.f32 %v493, 0.0
        %v496 = vmax.f32 %v379, %v494
        %v497 = vmax.f32 %v380, %v495
        %s498 = scalar_lea.vmem %s195, 64 [#allocation2]
        %v499 = vld [vmem:[%s498] sm:$0xff]
        %v500 = vld [vmem:[%s498 + $0x8] sm:$0xff]
        %v501 = vld [vmem:[%s498 + $0x10] sm:$0x1]
        %v502 = vld [vmem:[%s498 + $0x18] sm:$0x1]
        %v503 = vlaneseq
        %v504 = vshrl.u32 %v503, 7
        %v505 = vsub.s32 0, %v504
        %v506 = vrot.slane %v499, %v505
        %v507 = vlaneseq
        %v508 = vshrl.u32 %v507, 7
        %v509 = vsub.s32 0, %v508
        %v510 = vrot.slane %v500, %v509
        %v511 = vmul.f32 %v232, %v506
        %v512 = vmul.f32 %v232, %v510
        %v513 = vlaneseq
        %v514 = vshrl.u32 %v513, 7
        %v515 = vsub.s32 1, %v514
        %v516 = vrot.slane %v499, %v515
        %v517 = vlaneseq
        %v518 = vshrl.u32 %v517, 7
        %v519 = vsub.s32 1, %v518
        %v520 = vrot.slane %v500, %v519
        %v521 = vmul.f32 %v246, %v516
        %v522 = vmul.f32 %v246, %v520
        %v523 = vadd.f32 %v511, %v521
        %v524 = vadd.f32 %v512, %v522
        %v525 = vlaneseq
        %v526 = vshrl.u32 %v525, 7
        %v527 = vsub.s32 2, %v526
        %v528 = vrot.slane %v499, %v527
        %v529 = vlaneseq
        %v530 = vshrl.u32 %v529, 7
        %v531 = vsub.s32 2, %v530
        %v532 = vrot.slane %v500, %v531
        %v533 = vmul.f32 %v262, %v528
        %v534 = vmul.f32 %v262, %v532
        %v535 = vadd.f32 %v523, %v533
        %v536 = vadd.f32 %v524, %v534
        %v537 = vlaneseq
        %v538 = vshrl.u32 %v537, 7
        %v539 = vsub.s32 3, %v538
        %v540 = vrot.slane %v499, %v539
        %v541 = vlaneseq
        %v542 = vshrl.u32 %v541, 7
        %v543 = vsub.s32 3, %v542
        %v544 = vrot.slane %v500, %v543
        %v545 = vmul.f32 %v278, %v540
        %v546 = vmul.f32 %v278, %v544
        %v547 = vadd.f32 %v535, %v545
        %v548 = vadd.f32 %v536, %v546
        %v549 = vlaneseq
        %v550 = vshrl.u32 %v549, 7
        %v551 = vsub.s32 4, %v550
        %v552 = vrot.slane %v499, %v551
        %v553 = vlaneseq
        %v554 = vshrl.u32 %v553, 7
        %v555 = vsub.s32 4, %v554
        %v556 = vrot.slane %v500, %v555
        %v557 = vmul.f32 %v294, %v552
        %v558 = vmul.f32 %v294, %v556
        %v559 = vadd.f32 %v547, %v557
        %v560 = vadd.f32 %v548, %v558
        %v561 = vlaneseq
        %v562 = vshrl.u32 %v561, 7
        %v563 = vsub.s32 5, %v562
        %v564 = vrot.slane %v499, %v563
        %v565 = vlaneseq
        %v566 = vshrl.u32 %v565, 7
        %v567 = vsub.s32 5, %v566
        %v568 = vrot.slane %v500, %v567
        %v569 = vmul.f32 %v310, %v564
        %v570 = vmul.f32 %v310, %v568
        %v571 = vadd.f32 %v559, %v569
        %v572 = vadd.f32 %v560, %v570
        %v573 = vlaneseq
        %v574 = vshrl.u32 %v573, 7
        %v575 = vsub.s32 6, %v574
        %v576 = vrot.slane %v499, %v575
        %v577 = vlaneseq
        %v578 = vshrl.u32 %v577, 7
        %v579 = vsub.s32 6, %v578
        %v580 = vrot.slane %v500, %v579
        %v581 = vmul.f32 %v326, %v576
        %v582 = vmul.f32 %v326, %v580
        %v583 = vadd.f32 %v571, %v581
        %v584 = vadd.f32 %v572, %v582
        %v585 = vlaneseq
        %v586 = vshrl.u32 %v585, 7
        %v587 = vsub.s32 7, %v586
        %v588 = vrot.slane %v499, %v587
        %v589 = vlaneseq
        %v590 = vshrl.u32 %v589, 7
        %v591 = vsub.s32 7, %v590
        %v592 = vrot.slane %v500, %v591
        %v593 = vmul.f32 %v342, %v588
        %v594 = vmul.f32 %v342, %v592
        %v595 = vadd.f32 %v583, %v593
        %v596 = vadd.f32 %v584, %v594
        %v597 = vlaneseq
        %v598 = vshrl.u32 %v597, 7
        %v599 = vsub.s32 0, %v598
        %v600 = vrot.slane %v501, %v599
        %v601 = vlaneseq
        %v602 = vshrl.u32 %v601, 7
        %v603 = vsub.s32 0, %v602
        %v604 = vrot.slane %v502, %v603
        %v605 = vmul.f32 %v358, %v600
        %v606 = vmul.f32 %v358, %v604
        %v607 = vadd.f32 %v595, %v605
        %v608 = vadd.f32 %v596, %v606
        %v609 = vadd.f32 %v607, %v375
        %v610 = vadd.f32 %v608, %v375
        %v611 = vmax.f32 %v609, 0.0
        %v612 = vmax.f32 %v610, 0.0
        %v613 = vmax.f32 %v496, %v611
        %v614 = vmax.f32 %v497, %v612
        %s615 = scalar_lea.vmem %s195, 96 [#allocation2]
        %v616 = vld [vmem:[%s615] sm:$0xff]
        %v617 = vld [vmem:[%s615 + $0x8] sm:$0xff]
        %v618 = vld [vmem:[%s615 + $0x10] sm:$0x1]
        %v619 = vld [vmem:[%s615 + $0x18] sm:$0x1]
        %v620 = vlaneseq
        %v621 = vshrl.u32 %v620, 7
        %v622 = vsub.s32 0, %v621
        %v623 = vrot.slane %v616, %v622
        %v624 = vlaneseq
        %v625 = vshrl.u32 %v624, 7
        %v626 = vsub.s32 0, %v625
        %v627 = vrot.slane %v617, %v626
        %v628 = vmul.f32 %v232, %v623
        %v629 = vmul.f32 %v232, %v627
        %v630 = vlaneseq
        %v631 = vshrl.u32 %v630, 7
        %v632 = vsub.s32 1, %v631
        %v633 = vrot.slane %v616, %v632
        %v634 = vlaneseq
        %v635 = vshrl.u32 %v634, 7
        %v636 = vsub.s32 1, %v635
        %v637 = vrot.slane %v617, %v636
        %v638 = vmul.f32 %v246, %v633
        %v639 = vmul.f32 %v246, %v637
        %v640 = vadd.f32 %v628, %v638
        %v641 = vadd.f32 %v629, %v639
        %v642 = vlaneseq
        %v643 = vshrl.u32 %v642, 7
        %v644 = vsub.s32 2, %v643
        %v645 = vrot.slane %v616, %v644
        %v646 = vlaneseq
        %v647 = vshrl.u32 %v646, 7
        %v648 = vsub.s32 2, %v647
        %v649 = vrot.slane %v617, %v648
        %v650 = vmul.f32 %v262, %v645
        %v651 = vmul.f32 %v262, %v649
        %v652 = vadd.f32 %v640, %v650
        %v653 = vadd.f32 %v641, %v651
        %v654 = vlaneseq
        %v655 = vshrl.u32 %v654, 7
        %v656 = vsub.s32 3, %v655
        %v657 = vrot.slane %v616, %v656
        %v658 = vlaneseq
        %v659 = vshrl.u32 %v658, 7
        %v660 = vsub.s32 3, %v659
        %v661 = vrot.slane %v617, %v660
        %v662 = vmul.f32 %v278, %v657
        %v663 = vmul.f32 %v278, %v661
        %v664 = vadd.f32 %v652, %v662
        %v665 = vadd.f32 %v653, %v663
        %v666 = vlaneseq
        %v667 = vshrl.u32 %v666, 7
        %v668 = vsub.s32 4, %v667
        %v669 = vrot.slane %v616, %v668
        %v670 = vlaneseq
        %v671 = vshrl.u32 %v670, 7
        %v672 = vsub.s32 4, %v671
        %v673 = vrot.slane %v617, %v672
        %v674 = vmul.f32 %v294, %v669
        %v675 = vmul.f32 %v294, %v673
        %v676 = vadd.f32 %v664, %v674
        %v677 = vadd.f32 %v665, %v675
        %v678 = vlaneseq
        %v679 = vshrl.u32 %v678, 7
        %v680 = vsub.s32 5, %v679
        %v681 = vrot.slane %v616, %v680
        %v682 = vlaneseq
        %v683 = vshrl.u32 %v682, 7
        %v684 = vsub.s32 5, %v683
        %v685 = vrot.slane %v617, %v684
        %v686 = vmul.f32 %v310, %v681
        %v687 = vmul.f32 %v310, %v685
        %v688 = vadd.f32 %v676, %v686
        %v689 = vadd.f32 %v677, %v687
        %v690 = vlaneseq
        %v691 = vshrl.u32 %v690, 7
        %v692 = vsub.s32 6, %v691
        %v693 = vrot.slane %v616, %v692
        %v694 = vlaneseq
        %v695 = vshrl.u32 %v694, 7
        %v696 = vsub.s32 6, %v695
        %v697 = vrot.slane %v617, %v696
        %v698 = vmul.f32 %v326, %v693
        %v699 = vmul.f32 %v326, %v697
        %v700 = vadd.f32 %v688, %v698
        %v701 = vadd.f32 %v689, %v699
        %v702 = vlaneseq
        %v703 = vshrl.u32 %v702, 7
        %v704 = vsub.s32 7, %v703
        %v705 = vrot.slane %v616, %v704
        %v706 = vlaneseq
        %v707 = vshrl.u32 %v706, 7
        %v708 = vsub.s32 7, %v707
        %v709 = vrot.slane %v617, %v708
        %v710 = vmul.f32 %v342, %v705
        %v711 = vmul.f32 %v342, %v709
        %v712 = vadd.f32 %v700, %v710
        %v713 = vadd.f32 %v701, %v711
        %v714 = vlaneseq
        %v715 = vshrl.u32 %v714, 7
        %v716 = vsub.s32 0, %v715
        %v717 = vrot.slane %v618, %v716
        %v718 = vlaneseq
        %v719 = vshrl.u32 %v718, 7
        %v720 = vsub.s32 0, %v719
        %v721 = vrot.slane %v619, %v720
        %v722 = vmul.f32 %v358, %v717
        %v723 = vmul.f32 %v358, %v721
        %v724 = vadd.f32 %v712, %v722
        %v725 = vadd.f32 %v713, %v723
        %v726 = vadd.f32 %v724, %v375
        %v727 = vadd.f32 %v725, %v375
        %v728 = vmax.f32 %v726, 0.0
        %v729 = vmax.f32 %v727, 0.0
        %v730 = vmax.f32 %v613, %v728
        %v731 = vmax.f32 %v614, %v729
        %v732 = vpack.c.bf16 %v730, %v730
        %v733 = vpack.c.bf16 %v731, %v731
        %v736 = vunpack.c.l.b16 %v732
        %v737 = vunpack.c.l.b16 %v733
        %v738 = vpack.c.b16 %v737, %v736
        %740 = vst [vmem:[%s221] sm:$0xff] %v738
        %s741 = smul.u32 2, %s14
        %p742 = scmp.lt.s32.totalorder %s741, 3
        %s743 = scalar_select %p742, %s741, 3
        %s744 = smul.addr %s743, 4
        %s745 = scalar_lea.vmem %s3, %s744
        // Predicated region
        $region56: #{mri_sequence_net_forward.2} parent=50 // pred_check
          %p746 = pneg %p100
        $region57: #{mri_sequence_net_forward.2} parent=50 // pred_check_branch
          %748 = sbr.rel (%p746) target = $region59
        $region58: #{mri_sequence_net_forward.2} parent=50 // pred_region
          %s749 = smul.u32 2, %s14
        $region59: #{mri_sequence_net_forward.2} parent=50 // pred_fallthru
          _
      $region51: #{mri_sequence_net_forward.2} parent=5 // pred_fallthru
        _
      %p750 = scmp.le.s32.totalorder 2, %s9
      // Predicated region
      $region60: #{mri_sequence_net_forward.2} parent=5 // pred_check
        %p751 = pneg %p750
      $region61: #{mri_sequence_net_forward.2} parent=5 // pred_check_branch
        %753 = sbr.rel (%p751) target = $region63
      $region62: #{mri_sequence_net_forward.2} parent=5 // pred_region
        %s754 = ssub.s32 %s9, 2
        // Predicated region
        $region64: #{mri_sequence_net_forward.2} parent=62 // pred_check
          %p755 = pneg %p106
        $region65: #{mri_sequence_net_forward.2} parent=62 // pred_check_branch
          %757 = sbr.rel (%p755) target = $region67
        $region66: #{mri_sequence_net_forward.2} parent=62 // pred_region
          %s758 = smul.u32 2, %s15
          %p759 = scmp.lt.s32.totalorder %s758, 3
          %s760 = scalar_select %p759, %s758, 3
          %s761 = smul.addr %s760, 4
          %s762 = scalar_lea.vmem %s3, %s761
        $region67: #{mri_sequence_net_forward.2} parent=62 // pred_fallthru
          _
      $region63: #{mri_sequence_net_forward.2} parent=5 // pred_fallthru
        _
    $region6: #{mri_sequence_net_forward.2} parent=1 // loop_footer
      %s13 = sadd.s32 1, %s9
    $region7: #{mri_sequence_net_forward.2} parent=1 // loop_footer_branch
      %8 = sbr.rel target = $region3
    $region8: #{mri_sequence_net_forward.2} parent=1 // loop_exit
      _

// kernel: mri_sequence_net_forward.3
$region0: #{mri_sequence_net_forward.3}
  #allocation0 [shape = 'u32[]', space=smem, size = 0x4, offset = 0x4, fixed_abs, tag = 'smem constant byte address 0x4 - core index']
  #allocation1 [shape = 'u32[144,128]{1,0:T(1,128)}', space=vmem, size = 0x12000, scoped, tag = 'internal scratch']
  #allocation2 [shape = 'f32[8,256]{1,0:T(8,128)}', space=vmem, size = 0x2000, scoped, tag = 'scratch operand']
  #allocation3 [shape = 'f32[32,128]{1,0:T(8,128)}', space=vmem, size = 0x4000, scoped, tag = 'scratch operand']
  %s0 = inlined_call_operand.vmem [shape: bf16[512,72], index: 0, kind: input, shape index: {}]
  %s1 = inlined_call_operand.vmem [shape: bf16[72,16], index: 1, kind: input, shape index: {}]
  %s2 = inlined_call_operand.vmem [shape: f32[1,16], index: 2, kind: input, shape index: {}]
  %s3 = inlined_call_operand.vmem [shape: bf16[256,128], index: 3, kind: input, shape index: {}]
  %s4 = inlined_call_operand.vmem [shape: bf16[32,128], index: 4, kind: input, shape index: {}]
  %s5 = inlined_call_operand.vmem [shape: f32[1,128], index: 5, kind: input, shape index: {}]
  %s6 = inlined_call_operand.vmem [shape: f32[32,2], index: 6, kind: input, shape index: {}]
  %s7 = inlined_call_operand.vmem [shape: f32[1,2], index: 7, kind: input, shape index: {}]
  %s8 = inlined_call_operand.hbm [shape: f32[2,2], index: 8, kind: output, shape index: {}]
  %s9 = sld [smem:[#allocation0]]
  $region42: #{mri_sequence_net_forward.3} parent=0
    _
  %s11 = ssub.s32 1, %s9
  %s12 = scalar_select 0, %s11, %s9
  $region1: #{mri_sequence_net_forward.3} parent=0
    #allocation4 [shape = 'u8[1024]{0}', space=vmem, size = 0x400, scoped, tag = 'output window, operand 0, single buffered']
    #allocation5 [shape = 's32[1]{0}', space=sflag, size = 0x4, scoped, tag = 'scoped memory for mri_sequence_net_forward.3']
    %13 = vsyncpa [#allocation5], 0
    // Predicated region
    $region2: #{mri_sequence_net_forward.3} parent=1 // pred_check
      _
    $region3: #{mri_sequence_net_forward.3} parent=1 // pred_check_branch
      %15 = sbr.rel (0) target = $region5
    $region4: #{mri_sequence_net_forward.3} parent=1 // pred_region
      _
    $region5: #{mri_sequence_net_forward.3} parent=1 // pred_fallthru
      _
    // Predicated region
    $region6: #{mri_sequence_net_forward.3} parent=1 // pred_check
      _
    $region7: #{mri_sequence_net_forward.3} parent=1 // pred_check_branch
      %17 = sbr.rel (0) target = $region9
    $region8: #{mri_sequence_net_forward.3} parent=1 // pred_region
      _
    $region9: #{mri_sequence_net_forward.3} parent=1 // pred_fallthru
      _
    // Predicated region
    $region10: #{mri_sequence_net_forward.3} parent=1 // pred_check
      _
    $region11: #{mri_sequence_net_forward.3} parent=1 // pred_check_branch
      %19 = sbr.rel (0) target = $region13
    $region12: #{mri_sequence_net_forward.3} parent=1 // pred_region
      _
    $region13: #{mri_sequence_net_forward.3} parent=1 // pred_fallthru
      _
    // Predicated region
    $region14: #{mri_sequence_net_forward.3} parent=1 // pred_check
      _
    $region15: #{mri_sequence_net_forward.3} parent=1 // pred_check_branch
      %21 = sbr.rel (0) target = $region17
    $region16: #{mri_sequence_net_forward.3} parent=1 // pred_region
      _
    $region17: #{mri_sequence_net_forward.3} parent=1 // pred_fallthru
      _
    // Predicated region
    $region18: #{mri_sequence_net_forward.3} parent=1 // pred_check
      _
    $region19: #{mri_sequence_net_forward.3} parent=1 // pred_check_branch
      %23 = sbr.rel (0) target = $region21
    $region20: #{mri_sequence_net_forward.3} parent=1 // pred_region
      _
    $region21: #{mri_sequence_net_forward.3} parent=1 // pred_fallthru
      _
    // Predicated region
    $region22: #{mri_sequence_net_forward.3} parent=1 // pred_check
      _
    $region23: #{mri_sequence_net_forward.3} parent=1 // pred_check_branch
      %25 = sbr.rel (0) target = $region25
    $region24: #{mri_sequence_net_forward.3} parent=1 // pred_region
      _
    $region25: #{mri_sequence_net_forward.3} parent=1 // pred_fallthru
      _
    // Predicated region
    $region26: #{mri_sequence_net_forward.3} parent=1 // pred_check
      _
    $region27: #{mri_sequence_net_forward.3} parent=1 // pred_check_branch
      %27 = sbr.rel (0) target = $region29
    $region28: #{mri_sequence_net_forward.3} parent=1 // pred_region
      _
    $region29: #{mri_sequence_net_forward.3} parent=1 // pred_fallthru
      _
    // Predicated region
    $region30: #{mri_sequence_net_forward.3} parent=1 // pred_check
      _
    $region31: #{mri_sequence_net_forward.3} parent=1 // pred_check_branch
      %29 = sbr.rel (0) target = $region33
    $region32: #{mri_sequence_net_forward.3} parent=1 // pred_region
      _
    $region33: #{mri_sequence_net_forward.3} parent=1 // pred_fallthru
      _
    %v31 = vld [vmem:[%s0] sm:$0xf]
    %v32 = vld [vmem:[%s0 + $0x4] sm:$0xf]
    %v33 = vld [vmem:[%s0 + $0x8] sm:$0xf]
    %v34 = vld [vmem:[%s0 + $0xc] sm:$0xf]
    %v35 = vld [vmem:[%s0 + $0x10] sm:$0xf]
    %v36 = vld [vmem:[%s0 + $0x14] sm:$0xf]
    %v37 = vld [vmem:[%s0 + $0x18] sm:$0xf]
    %v38 = vld [vmem:[%s0 + $0x1c] sm:$0xf]
    %v39 = vld [vmem:[%s0 + $0x20] sm:$0xf]
    %v40 = vld [vmem:[%s0 + $0x24] sm:$0xf]
    %v41 = vld [vmem:[%s0 + $0x28] sm:$0xf]
    %v42 = vld [vmem:[%s0 + $0x2c] sm:$0xf]
    %v43 = vld [vmem:[%s0 + $0x30] sm:$0xf]
    %v44 = vld [vmem:[%s0 + $0x34] sm:$0xf]
    %v45 = vld [vmem:[%s0 + $0x38] sm:$0xf]
    %v46 = vld [vmem:[%s0 + $0x3c] sm:$0xf]
    %v47 = vld [vmem:[%s0 + $0x40] sm:$0xf]
    %v48 = vld [vmem:[%s0 + $0x44] sm:$0xf]
    %v49 = vld [vmem:[%s0 + $0x48] sm:$0xf]
    %v50 = vld [vmem:[%s0 + $0x4c] sm:$0xf]
    %v51 = vld [vmem:[%s0 + $0x50] sm:$0xf]
    %v52 = vld [vmem:[%s0 + $0x54] sm:$0xf]
    %v53 = vld [vmem:[%s0 + $0x58] sm:$0xf]
    %v54 = vld [vmem:[%s0 + $0x5c] sm:$0xf]
    %v55 = vld [vmem:[%s0 + $0x60] sm:$0xf]
    %v56 = vld [vmem:[%s0 + $0x64] sm:$0xf]
    %v57 = vld [vmem:[%s0 + $0x68] sm:$0xf]
    %v58 = vld [vmem:[%s0 + $0x6c] sm:$0xf]
    %v59 = vld [vmem:[%s0 + $0x70] sm:$0xf]
    %v60 = vld [vmem:[%s0 + $0x74] sm:$0xf]
    %v61 = vld [vmem:[%s0 + $0x78] sm:$0xf]
    %v62 = vld [vmem:[%s0 + $0x7c] sm:$0xf]
    %v63 = vld [vmem:[%s0 + $0x80] sm:$0xf]
    %v64 = vld [vmem:[%s0 + $0x84] sm:$0xf]
    %v65 = vld [vmem:[%s0 + $0x88] sm:$0xf]
    %v66 = vld [vmem:[%s0 + $0x8c] sm:$0xf]
    %v67 = vld [vmem:[%s0 + $0x90] sm:$0xf]
    %v68 = vld [vmem:[%s0 + $0x94] sm:$0xf]
    %v69 = vld [vmem:[%s0 + $0x98] sm:$0xf]
    %v70 = vld [vmem:[%s0 + $0x9c] sm:$0xf]
    %v71 = vld [vmem:[%s0 + $0xa0] sm:$0xf]
    %v72 = vld [vmem:[%s0 + $0xa4] sm:$0xf]
    %v73 = vld [vmem:[%s0 + $0xa8] sm:$0xf]
    %v74 = vld [vmem:[%s0 + $0xac] sm:$0xf]
    %v75 = vld [vmem:[%s0 + $0xb0] sm:$0xf]
    %v76 = vld [vmem:[%s0 + $0xb4] sm:$0xf]
    %v77 = vld [vmem:[%s0 + $0xb8] sm:$0xf]
    %v78 = vld [vmem:[%s0 + $0xbc] sm:$0xf]
    %v79 = vld [vmem:[%s0 + $0xc0] sm:$0xf]
    %v80 = vld [vmem:[%s0 + $0xc4] sm:$0xf]
    %v81 = vld [vmem:[%s0 + $0xc8] sm:$0xf]
    %v82 = vld [vmem:[%s0 + $0xcc] sm:$0xf]
    %v83 = vld [vmem:[%s0 + $0xd0] sm:$0xf]
    %v84 = vld [vmem:[%s0 + $0xd4] sm:$0xf]
    %v85 = vld [vmem:[%s0 + $0xd8] sm:$0xf]
    %v86 = vld [vmem:[%s0 + $0xdc] sm:$0xf]
    %v87 = vld [vmem:[%s0 + $0xe0] sm:$0xf]
    %v88 = vld [vmem:[%s0 + $0xe4] sm:$0xf]
    %v89 = vld [vmem:[%s0 + $0xe8] sm:$0xf]
    %v90 = vld [vmem:[%s0 + $0xec] sm:$0xf]
    %v91 = vld [vmem:[%s0 + $0xf0] sm:$0xf]
    %v92 = vld [vmem:[%s0 + $0xf4] sm:$0xf]
    %v93 = vld [vmem:[%s0 + $0xf8] sm:$0xf]
    %v94 = vld [vmem:[%s0 + $0xfc] sm:$0xf]
    %v95 = vld [vmem:[%s1] sm:$0xf]
    %v96 = vld [vmem:[%s1 + $0x4] sm:$0xf]
    %v97 = vld [vmem:[%s1 + $0x8] sm:$0xf]
    %v98 = vld [vmem:[%s1 + $0xc] sm:$0xf]
    %v99 = vld [vmem:[%s1 + $0x10] sm:$0xf]
    %v100 = vld [vmem:[%s1 + $0x14] sm:$0xf]
    %v101 = vld [vmem:[%s1 + $0x18] sm:$0xf]
    %v102 = vld [vmem:[%s1 + $0x1c] sm:$0xf]
    %v103 = vld [vmem:[%s1 + $0x20] sm:$0xf]
    %v104 = vld [vmem:[%s2] sm:$0x1]
    %v106 = vlaneseq
    %v107 = vshrl.u32 %v106, 7
    %v108 = vsub.s32 0, %v107
    %v109 = vrot.slane %v104, %v108
    %v175 = vunpack.c.l.b16 %v31
    %v176 = vunpack.c.l.b16 %v32
    %v177 = vunpack.c.l.b16 %v33
    %v178 = vunpack.c.l.b16 %v34
    %v179 = vunpack.c.l.b16 %v35
    %v180 = vunpack.c.l.b16 %v36
    %v181 = vunpack.c.l.b16 %v37
    %v182 = vunpack.c.l.b16 %v38
    %v183 = vunpack.c.l.b16 %v39
    %v184 = vunpack.c.l.b16 %v40
    %v185 = vunpack.c.l.b16 %v41
    %v186 = vunpack.c.l.b16 %v42
    %v187 = vunpack.c.l.b16 %v43
    %v188 = vunpack.c.l.b16 %v44
    %v189 = vunpack.c.l.b16 %v45
    %v190 = vunpack.c.l.b16 %v46
    %v191 = vunpack.c.l.b16 %v47
    %v192 = vunpack.c.l.b16 %v48
    %v193 = vunpack.c.l.b16 %v49
    %v194 = vunpack.c.l.b16 %v50
    %v195 = vunpack.c.l.b16 %v51
    %v196 = vunpack.c.l.b16 %v52
    %v197 = vunpack.c.l.b16 %v53
    %v198 = vunpack.c.l.b16 %v54
    %v199 = vunpack.c.l.b16 %v55
    %v200 = vunpack.c.l.b16 %v56
    %v201 = vunpack.c.l.b16 %v57
    %v202 = vunpack.c.l.b16 %v58
    %v203 = vunpack.c.l.b16 %v59
    %v204 = vunpack.c.l.b16 %v60
    %v205 = vunpack.c.l.b16 %v61
    %v206 = vunpack.c.l.b16 %v62
    %v207 = vunpack.c.l.b16 %v63
    %v208 = vunpack.c.l.b16 %v64
    %v209 = vunpack.c.l.b16 %v65
    %v210 = vunpack.c.l.b16 %v66
    %v211 = vunpack.c.l.b16 %v67
    %v212 = vunpack.c.l.b16 %v68
    %v213 = vunpack.c.l.b16 %v69
    %v214 = vunpack.c.l.b16 %v70
    %v215 = vunpack.c.l.b16 %v71
    %v216 = vunpack.c.l.b16 %v72
    %v217 = vunpack.c.l.b16 %v73
    %v218 = vunpack.c.l.b16 %v74
    %v219 = vunpack.c.l.b16 %v75
    %v220 = vunpack.c.l.b16 %v76
    %v221 = vunpack.c.l.b16 %v77
    %v222 = vunpack.c.l.b16 %v78
    %v223 = vunpack.c.l.b16 %v79
    %v224 = vunpack.c.l.b16 %v80
    %v225 = vunpack.c.l.b16 %v81
    %v226 = vunpack.c.l.b16 %v82
    %v227 = vunpack.c.l.b16 %v83
    %v228 = vunpack.c.l.b16 %v84
    %v229 = vunpack.c.l.b16 %v85
    %v230 = vunpack.c.l.b16 %v86
    %v231 = vunpack.c.l.b16 %v87
    %v232 = vunpack.c.l.b16 %v88
    %v233 = vunpack.c.l.b16 %v89
    %v234 = vunpack.c.l.b16 %v90
    %v235 = vunpack.c.l.b16 %v91
    %v236 = vunpack.c.l.b16 %v92
    %v237 = vunpack.c.l.b16 %v93
    %v238 = vunpack.c.l.b16 %v94
    %v239 = vpack.c.b16 %v176, %v175
    %v240 = vpack.c.b16 %v178, %v177
    %v241 = vpack.c.b16 %v180, %v179
    %v242 = vpack.c.b16 %v182, %v181
    %v243 = vpack.c.b16 %v184, %v183
    %v244 = vpack.c.b16 %v186, %v185
    %v245 = vpack.c.b16 %v188, %v187
    %v246 = vpack.c.b16 %v190, %v189
    %v247 = vpack.c.b16 %v192, %v191
    %v248 = vpack.c.b16 %v194, %v193
    %v249 = vpack.c.b16 %v196, %v195
    %v250 = vpack.c.b16 %v198, %v197
    %v251 = vpack.c.b16 %v200, %v199
    %v252 = vpack.c.b16 %v202, %v201
    %v253 = vpack.c.b16 %v204, %v203
    %v254 = vpack.c.b16 %v206, %v205
    %v255 = vpack.c.b16 %v208, %v207
    %v256 = vpack.c.b16 %v210, %v209
    %v257 = vpack.c.b16 %v212, %v211
    %v258 = vpack.c.b16 %v214, %v213
    %v259 = vpack.c.b16 %v216, %v215
    %v260 = vpack.c.b16 %v218, %v217
    %v261 = vpack.c.b16 %v220, %v219
    %v262 = vpack.c.b16 %v222, %v221
    %v263 = vpack.c.b16 %v224, %v223
    %v264 = vpack.c.b16 %v226, %v225
    %v265 = vpack.c.b16 %v228, %v227
    %v266 = vpack.c.b16 %v230, %v229
    %v267 = vpack.c.b16 %v232, %v231
    %v268 = vpack.c.b16 %v234, %v233
    %v269 = vpack.c.b16 %v236, %v235
    %v270 = vpack.c.b16 %v238, %v237
    %v280 = vunpack.c.l.b16 %v95
    %v281 = vunpack.c.l.b16 %v96
    %v282 = vunpack.c.l.b16 %v97
    %v283 = vunpack.c.l.b16 %v98
    %v284 = vunpack.c.l.b16 %v99
    %v285 = vunpack.c.l.b16 %v100
    %v286 = vunpack.c.l.b16 %v101
    %v287 = vunpack.c.l.b16 %v102
    %v288 = vunpack.c.l.b16 %v103
    %v289 = vpack.c.b16 %v281, %v280
    %v290 = vpack.c.b16 %v283, %v282
    %v291 = vpack.c.b16 %v285, %v284
    %v292 = vpack.c.b16 %v287, %v286
    %v293 = vpack.c.b16 %v288, %v288
    %vm298 = vcmask 588800
    %v300 = vsel %vm298, %v239, 0
    %v303 = vsel %vm298, %v240, 0
    %v306 = vsel %vm298, %v241, 0
    %v309 = vsel %vm298, %v242, 0
    %v312 = vsel %vm298, %v243, 0
    %v315 = vsel %vm298, %v244, 0
    %v318 = vsel %vm298, %v245, 0
    %v321 = vsel %vm298, %v246, 0
    %v324 = vsel %vm298, %v247, 0
    %v327 = vsel %vm298, %v248, 0
    %v330 = vsel %vm298, %v249, 0
    %v333 = vsel %vm298, %v250, 0
    %v336 = vsel %vm298, %v251, 0
    %v339 = vsel %vm298, %v252, 0
    %v342 = vsel %vm298, %v253, 0
    %v345 = vsel %vm298, %v254, 0
    %v348 = vsel %vm298, %v255, 0
    %v351 = vsel %vm298, %v256, 0
    %v354 = vsel %vm298, %v257, 0
    %v357 = vsel %vm298, %v258, 0
    %v360 = vsel %vm298, %v259, 0
    %v363 = vsel %vm298, %v260, 0
    %v366 = vsel %vm298, %v261, 0
    %v369 = vsel %vm298, %v262, 0
    %v372 = vsel %vm298, %v263, 0
    %v375 = vsel %vm298, %v264, 0
    %v378 = vsel %vm298, %v265, 0
    %v381 = vsel %vm298, %v266, 0
    %v384 = vsel %vm298, %v267, 0
    %v387 = vsel %vm298, %v268, 0
    %v390 = vsel %vm298, %v269, 0
    %v393 = vsel %vm298, %v270, 0
    %vm395 = vcmask 1043456
    %v397 = vsel %vm395, %v293, 0
    %399 = vmatprep.subr.bf16.mxu0 0
    %400 = vmatpush1.bf16.msra.mxu0 %v289
    %401 = vmatprep.subr.bf16.mxu0 0
    %402 = vmatpush1.bf16.msra.mxu0 %v290
    %403 = vmatprep.subr.bf16.mxu0 0
    %404 = vmatpush1.bf16.msra.mxu0 %v291
    %405 = vmatprep.subr.bf16.mxu0 0
    %406 = vmatpush1.bf16.msra.mxu0 %v292
    %407 = vmatprep.subr.bf16.mxu0 0
    %408 = vmatpush1.bf16.msra.mxu0 %v397
    %409 = vmatprep.subr.bf16.mxu0 0
    %410 = vmatpush1.bf16.msra.mxu0 0
    %411 = vmatprep.subr.bf16.mxu0 0
    %412 = vmatpush1.bf16.msra.mxu0 0
    %413 = vmatprep.subr.bf16.mxu0 0
    %414 = vmatpush1.bf16.msra.mxu0 0
    %415 = vmatprep.subr.bf16.mxu0 0
    %416 = vmatpush1.bf16.msra.mxu0 0
    %417 = vmatprep.subr.bf16.mxu0 0
    %418 = vmatpush1.bf16.msra.mxu0 0
    %419 = vmatprep.subr.bf16.mxu0 0
    %420 = vmatpush1.bf16.msra.mxu0 0
    %421 = vmatprep.subr.bf16.mxu0 0
    %422 = vmatpush1.bf16.msra.mxu0 0
    %423 = vmatprep.subr.bf16.mxu0 0
    %424 = vmatpush1.bf16.msra.mxu0 0
    %425 = vmatprep.subr.bf16.mxu0 0
    %426 = vmatpush1.bf16.msra.mxu0 0
    %427 = vmatprep.subr.bf16.mxu0 0
    %428 = vmatpush1.bf16.msra.mxu0 0
    %429 = vmatprep.subr.bf16.mxu0 0
    %430 = vmatpush1.bf16.msra.mxu0 0
    %431 = vmatprep.mubr.bf16.mxu0 0
    %432 = vmatmul.mubr.bf16.gmra.mrb[0].mxu0 %v300
    %v433 = vpop.f32.mrb[0].mxu0
    %v434 = vadd.f32 %v109, %v433
    %v435 = vpop.f32.mrb[0].mxu0
    %v436 = vpop.f32.mrb[0].mxu0
    %v437 = vadd.f32 %v109, %v436
    %v438 = vpop.f32.mrb[0].mxu0
    %439 = vmatprep.mubr.bf16.mxu0 0
    %440 = vmatmul.mubr.bf16.gmra.mrb[0].mxu0 %v303
    %v441 = vpop.f32.mrb[0].mxu0
    %v442 = vadd.f32 %v109, %v441
    %v443 = vpop.f32.mrb[0].mxu0
    %v444 = vpop.f32.mrb[0].mxu0
    %v445 = vadd.f32 %v109, %v444
    %v446 = vpop.f32.mrb[0].mxu0
    %447 = vmatprep.mubr.bf16.mxu0 0
    %448 = vmatmul.mubr.bf16.gmra.mrb[0].mxu0 %v306
    %v449 = vpop.f32.mrb[0].mxu0
    %v450 = vadd.f32 %v109, %v449
    %v451 = vpop.f32.mrb[0].mxu0
    %v452 = vpop.f32.mrb[0].mxu0
    %v453 = vadd.f32 %v109, %v452
    %v454 = vpop.f32.mrb[0].mxu0
    %455 = vmatprep.mubr.bf16.mxu0 0
    %456 = vmatmul.mubr.bf16.gmra.mrb[0].mxu0 %v309
    %v457 = vpop.f32.mrb[0].mxu0
    %v458 = vadd.f32 %v109, %v457
    %v459 = vpop.f32.mrb[0].mxu0
    %v460 = vpop.f32.mrb[0].mxu0
    %v461 = vadd.f32 %v109, %v460
    %v462 = vpop.f32.mrb[0].mxu0
    %463 = vmatprep.mubr.bf16.mxu0 0
    %464 = vmatmul.mubr.bf16.gmra.mrb[0].mxu0 %v312
    %v465 = vpop.f32.mrb[0].mxu0
    %v466 = vadd.f32 %v109, %v465
    %v467 = vpop.f32.mrb[0].mxu0
    %v468 = vpop.f32.mrb[0].mxu0
    %v469 = vadd.f32 %v109, %v468
    %v470 = vpop.f32.mrb[0].mxu0
    %471 = vmatprep.mubr.bf16.mxu0 0
    %472 = vmatmul.mubr.bf16.gmra.mrb[0].mxu0 %v315
    %v473 = vpop.f32.mrb[0].mxu0
    %v474 = vadd.f32 %v109, %v473
    %v475 = vpop.f32.mrb[0].mxu0
    %v476 = vpop.f32.mrb[0].mxu0
    %v477 = vadd.f32 %v109, %v476
    %v478 = vpop.f32.mrb[0].mxu0
    %479 = vmatprep.mubr.bf16.mxu0 0
    %480 = vmatmul.mubr.bf16.gmra.mrb[0].mxu0 %v318
    %v481 = vpop.f32.mrb[0].mxu0
    %v482 = vadd.f32 %v109, %v481
    %v483 = vpop.f32.mrb[0].mxu0
    %v484 = vpop.f32.mrb[0].mxu0
    %v485 = vadd.f32 %v109, %v484
    %v486 = vpop.f32.mrb[0].mxu0
    %487 = vmatprep.mubr.bf16.mxu0 0
    %488 = vmatmul.mubr.bf16.gmra.mrb[0].mxu0 %v321
    %v489 = vpop.f32.mrb[0].mxu0
    %v490 = vadd.f32 %v109, %v489
    %v491 = vpop.f32.mrb[0].mxu0
    %v492 = vpop.f32.mrb[0].mxu0
    %v493 = vadd.f32 %v109, %v492
    %v494 = vpop.f32.mrb[0].mxu0
    %495 = vmatprep.mubr.bf16.mxu0 0
    %496 = vmatmul.mubr.bf16.gmra.mrb[0].mxu0 %v324
    %v497 = vpop.f32.mrb[0].mxu0
    %v498 = vadd.f32 %v109, %v497
    %v499 = vpop.f32.mrb[0].mxu0
    %v500 = vpop.f32.mrb[0].mxu0
    %v501 = vadd.f32 %v109, %v500
    %v502 = vpop.f32.mrb[0].mxu0
    %503 = vmatprep.mubr.bf16.mxu0 0
    %504 = vmatmul.mubr.bf16.gmra.mrb[0].mxu0 %v327
    %v505 = vpop.f32.mrb[0].mxu0
    %v506 = vadd.f32 %v109, %v505
    %v507 = vpop.f32.mrb[0].mxu0
    %v508 = vpop.f32.mrb[0].mxu0
    %v509 = vadd.f32 %v109, %v508
    %v510 = vpop.f32.mrb[0].mxu0
    %511 = vmatprep.mubr.bf16.mxu0 0
    %512 = vmatmul.mubr.bf16.gmra.mrb[0].mxu0 %v330
    %v513 = vpop.f32.mrb[0].mxu0
    %v514 = vadd.f32 %v109, %v513
    %v515 = vpop.f32.mrb[0].mxu0
    %v516 = vpop.f32.mrb[0].mxu0
    %v517 = vadd.f32 %v109, %v516
    %v518 = vpop.f32.mrb[0].mxu0
    %519 = vmatprep.mubr.bf16.mxu0 0
    %520 = vmatmul.mubr.bf16.gmra.mrb[0].mxu0 %v333
    %v521 = vpop.f32.mrb[0].mxu0
    %v522 = vadd.f32 %v109, %v521
    %v523 = vpop.f32.mrb[0].mxu0
    %v524 = vpop.f32.mrb[0].mxu0
    %v525 = vadd.f32 %v109, %v524
    %v526 = vpop.f32.mrb[0].mxu0
    %527 = vmatprep.mubr.bf16.mxu0 0
    %528 = vmatmul.mubr.bf16.gmra.mrb[0].mxu0 %v336
    %v529 = vpop.f32.mrb[0].mxu0
    %v530 = vadd.f32 %v109, %v529
    %v531 = vpop.f32.mrb[0].mxu0
    %v532 = vpop.f32.mrb[0].mxu0
    %v533 = vadd.f32 %v109, %v532
    %v534 = vpop.f32.mrb[0].mxu0
    %535 = vmatprep.mubr.bf16.mxu0 0
    %536 = vmatmul.mubr.bf16.gmra.mrb[0].mxu0 %v339
    %v537 = vpop.f32.mrb[0].mxu0
    %v538 = vadd.f32 %v109, %v537
    %v539 = vpop.f32.mrb[0].mxu0
    %v540 = vpop.f32.mrb[0].mxu0
    %v541 = vadd.f32 %v109, %v540
    %v542 = vpop.f32.mrb[0].mxu0
    %543 = vmatprep.mubr.bf16.mxu0 0
    %544 = vmatmul.mubr.bf16.gmra.mrb[0].mxu0 %v342
    %v545 = vpop.f32.mrb[0].mxu0
    %v546 = vadd.f32 %v109, %v545
    %v547 = vpop.f32.mrb[0].mxu0
    %v548 = vpop.f32.mrb[0].mxu0
    %v549 = vadd.f32 %v109, %v548
    %v550 = vpop.f32.mrb[0].mxu0
    %551 = vmatprep.mubr.bf16.mxu0 0
    %552 = vmatmul.mubr.bf16.gmra.mrb[0].mxu0 %v345
    %v553 = vpop.f32.mrb[0].mxu0
    %v554 = vadd.f32 %v109, %v553
    %v555 = vpop.f32.mrb[0].mxu0
    %v556 = vpop.f32.mrb[0].mxu0
    %v557 = vadd.f32 %v109, %v556
    %v558 = vpop.f32.mrb[0].mxu0
    %559 = vmatprep.mubr.bf16.mxu0 0
    %560 = vmatmul.mubr.bf16.gmra.mrb[0].mxu0 %v348
    %v561 = vpop.f32.mrb[0].mxu0
    %v562 = vadd.f32 %v109, %v561
    %v563 = vpop.f32.mrb[0].mxu0
    %v564 = vpop.f32.mrb[0].mxu0
    %v565 = vadd.f32 %v109, %v564
    %v566 = vpop.f32.mrb[0].mxu0
    %567 = vmatprep.mubr.bf16.mxu0 0
    %568 = vmatmul.mubr.bf16.gmra.mrb[0].mxu0 %v351
    %v569 = vpop.f32.mrb[0].mxu0
    %v570 = vadd.f32 %v109, %v569
    %v571 = vpop.f32.mrb[0].mxu0
    %v572 = vpop.f32.mrb[0].mxu0
    %v573 = vadd.f32 %v109, %v572
    %v574 = vpop.f32.mrb[0].mxu0
    %575 = vmatprep.mubr.bf16.mxu0 0
    %576 = vmatmul.mubr.bf16.gmra.mrb[0].mxu0 %v354
    %v577 = vpop.f32.mrb[0].mxu0
    %v578 = vadd.f32 %v109, %v577
    %v579 = vpop.f32.mrb[0].mxu0
    %v580 = vpop.f32.mrb[0].mxu0
    %v581 = vadd.f32 %v109, %v580
    %v582 = vpop.f32.mrb[0].mxu0
    %583 = vmatprep.mubr.bf16.mxu0 0
    %584 = vmatmul.mubr.bf16.gmra.mrb[0].mxu0 %v357
    %v585 = vpop.f32.mrb[0].mxu0
    %v586 = vadd.f32 %v109, %v585
    %v587 = vpop.f32.mrb[0].mxu0
    %v588 = vpop.f32.mrb[0].mxu0
    %v589 = vadd.f32 %v109, %v588
    %v590 = vpop.f32.mrb[0].mxu0
    %591 = vmatprep.mubr.bf16.mxu0 0
    %592 = vmatmul.mubr.bf16.gmra.mrb[0].mxu0 %v360
    %v593 = vpop.f32.mrb[0].mxu0
    %v594 = vadd.f32 %v109, %v593
    %v595 = vpop.f32.mrb[0].mxu0
    %v596 = vpop.f32.mrb[0].mxu0
    %v597 = vadd.f32 %v109, %v596
    %v598 = vpop.f32.mrb[0].mxu0
    %599 = vmatprep.mubr.bf16.mxu0 0
    %600 = vmatmul.mubr.bf16.gmra.mrb[0].mxu0 %v363
    %v601 = vpop.f32.mrb[0].mxu0
    %v602 = vadd.f32 %v109, %v601
    %v603 = vpop.f32.mrb[0].mxu0
    %v604 = vpop.f32.mrb[0].mxu0
    %v605 = vadd.f32 %v109, %v604
    %v606 = vpop.f32.mrb[0].mxu0
    %607 = vmatprep.mubr.bf16.mxu0 0
    %608 = vmatmul.mubr.bf16.gmra.mrb[0].mxu0 %v366
    %v609 = vpop.f32.mrb[0].mxu0
    %v610 = vadd.f32 %v109, %v609
    %v611 = vpop.f32.mrb[0].mxu0
    %v612 = vpop.f32.mrb[0].mxu0
    %v613 = vadd.f32 %v109, %v612
    %v614 = vpop.f32.mrb[0].mxu0
    %615 = vmatprep.mubr.bf16.mxu0 0
    %616 = vmatmul.mubr.bf16.gmra.mrb[0].mxu0 %v369
    %v617 = vpop.f32.mrb[0].mxu0
    %v618 = vadd.f32 %v109, %v617
    %v619 = vpop.f32.mrb[0].mxu0
    %v620 = vpop.f32.mrb[0].mxu0
    %v621 = vadd.f32 %v109, %v620
    %v622 = vpop.f32.mrb[0].mxu0
    %623 = vmatprep.mubr.bf16.mxu0 0
    %624 = vmatmul.mubr.bf16.gmra.mrb[0].mxu0 %v372
    %v625 = vpop.f32.mrb[0].mxu0
    %v626 = vadd.f32 %v109, %v625
    %v627 = vpop.f32.mrb[0].mxu0
    %v628 = vpop.f32.mrb[0].mxu0
    %v629 = vadd.f32 %v109, %v628
    %v630 = vpop.f32.mrb[0].mxu0
    %631 = vmatprep.mubr.bf16.mxu0 0
    %632 = vmatmul.mubr.bf16.gmra.mrb[0].mxu0 %v375
    %v633 = vpop.f32.mrb[0].mxu0
    %v634 = vadd.f32 %v109, %v633
    %v635 = vpop.f32.mrb[0].mxu0
    %v636 = vpop.f32.mrb[0].mxu0
    %v637 = vadd.f32 %v109, %v636
    %v638 = vpop.f32.mrb[0].mxu0
    %639 = vmatprep.mubr.bf16.mxu0 0
    %640 = vmatmul.mubr.bf16.gmra.mrb[0].mxu0 %v378
    %v641 = vpop.f32.mrb[0].mxu0
    %v642 = vadd.f32 %v109, %v641
    %v643 = vpop.f32.mrb[0].mxu0
    %v644 = vpop.f32.mrb[0].mxu0
    %v645 = vadd.f32 %v109, %v644
    %v646 = vpop.f32.mrb[0].mxu0
    %647 = vmatprep.mubr.bf16.mxu0 0
    %648 = vmatmul.mubr.bf16.gmra.mrb[0].mxu0 %v381
    %v649 = vpop.f32.mrb[0].mxu0
    %v650 = vadd.f32 %v109, %v649
    %v651 = vpop.f32.mrb[0].mxu0
    %v652 = vpop.f32.mrb[0].mxu0
    %v653 = vadd.f32 %v109, %v652
    %v654 = vpop.f32.mrb[0].mxu0
    %655 = vmatprep.mubr.bf16.mxu0 0
    %656 = vmatmul.mubr.bf16.gmra.mrb[0].mxu0 %v384
    %v657 = vpop.f32.mrb[0].mxu0
    %v658 = vadd.f32 %v109, %v657
    %v659 = vpop.f32.mrb[0].mxu0
    %v660 = vpop.f32.mrb[0].mxu0
    %v661 = vadd.f32 %v109, %v660
    %v662 = vpop.f32.mrb[0].mxu0
    %663 = vmatprep.mubr.bf16.mxu0 0
    %664 = vmatmul.mubr.bf16.gmra.mrb[0].mxu0 %v387
    %v665 = vpop.f32.mrb[0].mxu0
    %v666 = vadd.f32 %v109, %v665
    %v667 = vpop.f32.mrb[0].mxu0
    %v668 = vpop.f32.mrb[0].mxu0
    %v669 = vadd.f32 %v109, %v668
    %v670 = vpop.f32.mrb[0].mxu0
    %671 = vmatprep.mubr.bf16.mxu0 0
    %672 = vmatmul.mubr.bf16.gmra.mrb[0].mxu0 %v390
    %v673 = vpop.f32.mrb[0].mxu0
    %v674 = vadd.f32 %v109, %v673
    %v675 = vpop.f32.mrb[0].mxu0
    %v676 = vpop.f32.mrb[0].mxu0
    %v677 = vadd.f32 %v109, %v676
    %v678 = vpop.f32.mrb[0].mxu0
    %679 = vmatprep.mubr.bf16.mxu0 0
    %680 = vmatmul.mubr.bf16.gmra.mrb[0].mxu0 %v393
    %v681 = vpop.f32.mrb[0].mxu0
    %v682 = vadd.f32 %v109, %v681
    %v683 = vpop.f32.mrb[0].mxu0
    %v684 = vpop.f32.mrb[0].mxu0
    %v685 = vadd.f32 %v109, %v684
    %v686 = vpop.f32.mrb[0].mxu0
    %687 = vdwg.mxu0
    %v688 = vmax.f32 %v434, 0.0
    %v689 = vmax.f32 %v437, 0.0
    %v690 = vmax.f32 %v442, 0.0
    %v691 = vmax.f32 %v445, 0.0
    %v692 = vmax.f32 %v450, 0.0
    %v693 = vmax.f32 %v453, 0.0
    %v694 = vmax.f32 %v458, 0.0
    %v695 = vmax.f32 %v461, 0.0
    %v696 = vmax.f32 %v466, 0.0
    %v697 = vmax.f32 %v469, 0.0
    %v698 = vmax.f32 %v474, 0.0
    %v699 = vmax.f32 %v477, 0.0
    %v700 = vmax.f32 %v482, 0.0
    %v701 = vmax.f32 %v485, 0.0
    %v702 = vmax.f32 %v490, 0.0
    %v703 = vmax.f32 %v493, 0.0
    %v704 = vmax.f32 %v498, 0.0
    %v705 = vmax.f32 %v501, 0.0
    %v706 = vmax.f32 %v506, 0.0
    %v707 = vmax.f32 %v509, 0.0
    %v708 = vmax.f32 %v514, 0.0
    %v709 = vmax.f32 %v517, 0.0
    %v710 = vmax.f32 %v522, 0.0
    %v711 = vmax.f32 %v525, 0.0
    %v712 = vmax.f32 %v530, 0.0
    %v713 = vmax.f32 %v533, 0.0
    %v714 = vmax.f32 %v538, 0.0
    %v715 = vmax.f32 %v541, 0.0
    %v716 = vmax.f32 %v546, 0.0
    %v717 = vmax.f32 %v549, 0.0
    %v718 = vmax.f32 %v554, 0.0
    %v719 = vmax.f32 %v557, 0.0
    %v720 = vmax.f32 %v562, 0.0
    %v721 = vmax.f32 %v565, 0.0
    %v722 = vmax.f32 %v570, 0.0
    %v723 = vmax.f32 %v573, 0.0
    %v724 = vmax.f32 %v578, 0.0
    %v725 = vmax.f32 %v581, 0.0
    %v726 = vmax.f32 %v586, 0.0
    %v727 = vmax.f32 %v589, 0.0
    %v728 = vmax.f32 %v594, 0.0
    %v729 = vmax.f32 %v597, 0.0
    %v730 = vmax.f32 %v602, 0.0
    %v731 = vmax.f32 %v605, 0.0
    %v732 = vmax.f32 %v610, 0.0
    %v733 = vmax.f32 %v613, 0.0
    %v734 = vmax.f32 %v618, 0.0
    %v735 = vmax.f32 %v621, 0.0
    %v736 = vmax.f32 %v626, 0.0
    %v737 = vmax.f32 %v629, 0.0
    %v738 = vmax.f32 %v634, 0.0
    %v739 = vmax.f32 %v637, 0.0
    %v740 = vmax.f32 %v642, 0.0
    %v741 = vmax.f32 %v645, 0.0
    %v742 = vmax.f32 %v650, 0.0
    %v743 = vmax.f32 %v653, 0.0
    %v744 = vmax.f32 %v658, 0.0
    %v745 = vmax.f32 %v661, 0.0
    %v746 = vmax.f32 %v666, 0.0
    %v747 = vmax.f32 %v669, 0.0
    %v748 = vmax.f32 %v674, 0.0
    %v749 = vmax.f32 %v677, 0.0
    %v750 = vmax.f32 %v682, 0.0
    %v751 = vmax.f32 %v685, 0.0
    %v752 = vmax.f32 %v688, %v704
    %v753 = vmax.f32 %v689, %v705
    %v754 = vmax.f32 %v690, %v706
    %v755 = vmax.f32 %v691, %v707
    %v756 = vmax.f32 %v692, %v708
    %v757 = vmax.f32 %v693, %v709
    %v758 = vmax.f32 %v694, %v710
    %v759 = vmax.f32 %v695, %v711
    %v760 = vmax.f32 %v696, %v712
    %v761 = vmax.f32 %v697, %v713
    %v762 = vmax.f32 %v698, %v714
    %v763 = vmax.f32 %v699, %v715
    %v764 = vmax.f32 %v700, %v716
    %v765 = vmax.f32 %v701, %v717
    %v766 = vmax.f32 %v702, %v718
    %v767 = vmax.f32 %v703, %v719
    %v768 = vmax.f32 %v720, %v736
    %v769 = vmax.f32 %v721, %v737
    %v770 = vmax.f32 %v722, %v738
    %v771 = vmax.f32 %v723, %v739
    %v772 = vmax.f32 %v724, %v740
    %v773 = vmax.f32 %v725, %v741
    %v774 = vmax.f32 %v726, %v742
    %v775 = vmax.f32 %v727, %v743
    %v776 = vmax.f32 %v728, %v744
    %v777 = vmax.f32 %v729, %v745
    %v778 = vmax.f32 %v730, %v746
    %v779 = vmax.f32 %v731, %v747
    %v780 = vmax.f32 %v732, %v748
    %v781 = vmax.f32 %v733, %v749
    %v782 = vmax.f32 %v734, %v750
    %v783 = vmax.f32 %v735, %v751
    %v784 = vmax.f32 %v752, %v768
    %v785 = vmax.f32 %v753, %v769
    %v786 = vmax.f32 %v754, %v770
    %v787 = vmax.f32 %v755, %v771
    %v788 = vmax.f32 %v756, %v772
    %v789 = vmax.f32 %v757, %v773
    %v790 = vmax.f32 %v758, %v774
    %v791 = vmax.f32 %v759, %v775
    %v792 = vmax.f32 %v760, %v776
    %v793 = vmax.f32 %v761, %v777
    %v794 = vmax.f32 %v762, %v778
    %v795 = vmax.f32 %v763, %v779
    %v796 = vmax.f32 %v764, %v780
    %v797 = vmax.f32 %v765, %v781
    %v798 = vmax.f32 %v766, %v782
    %v799 = vmax.f32 %v767, %v783
    %vm800 = vcmask 130048
    %801 = vst.msk [vmem:[#allocation2] sm:$0xff] %vm800, %v784
    %803 = vrot.lane.b32.xlu0 %v785, 16
    %v804 = vpop.permute.xlu0 %803
    %vm806 = vcmask 261248
    %807 = vst.msk [vmem:[#allocation2] sm:$0xff] %vm806, %v804
    %809 = vrot.lane.b32.xlu0 %v786, 32
    %v810 = vpop.permute.xlu0 %809
    %vm812 = vcmask 392448
    %813 = vst.msk [vmem:[#allocation2] sm:$0xff] %vm812, %v810
    %815 = vrot.lane.b32.xlu0 %v787, 48
    %v816 = vpop.permute.xlu0 %815
    %vm818 = vcmask 523648
    %819 = vst.msk [vmem:[#allocation2] sm:$0xff] %vm818, %v816
    %821 = vrot.lane.b32.xlu0 %v788, 64
    %v822 = vpop.permute.xlu0 %821
    %vm824 = vcmask 654848
    %825 = vst.msk [vmem:[#allocation2] sm:$0xff] %vm824, %v822
    %827 = vrot.lane.b32.xlu0 %v789, 80
    %v828 = vpop.permute.xlu0 %827
    %vm830 = vcmask 786048
    %831 = vst.msk [vmem:[#allocation2] sm:$0xff] %vm830, %v828
    %833 = vrot.lane.b32.xlu0 %v790, 96
    %v834 = vpop.permute.xlu0 %833
    %vm836 = vcmask 917248
    %837 = vst.msk [vmem:[#allocation2] sm:$0xff] %vm836, %v834
    %839 = vrot.lane.b32.xlu0 %v791, 112
    %v840 = vpop.permute.xlu0 %839
    %vm842 = vcmask 1048448
    %843 = vst.msk [vmem:[#allocation2] sm:$0xff] %vm842, %v840
    %844 = vst.msk [vmem:[#allocation2 + $0x8] sm:$0xff] %vm800, %v792
    %846 = vrot.lane.b32.xlu0 %v793, 16
    %v847 = vpop.permute.xlu0 %846
    %849 = vst.msk [vmem:[#allocation2 + $0x8] sm:$0xff] %vm806, %v847
    %851 = vrot.lane.b32.xlu0 %v794, 32
    %v852 = vpop.permute.xlu0 %851
    %854 = vst.msk [vmem:[#allocation2 + $0x8] sm:$0xff] %vm812, %v852
    %856 = vrot.lane.b32.xlu0 %v795, 48
    %v857 = vpop.permute.xlu0 %856
    %859 = vst.msk [vmem:[#allocation2 + $0x8] sm:$0xff] %vm818, %v857
    %861 = vrot.lane.b32.xlu0 %v796, 64
    %v862 = vpop.permute.xlu0 %861
    %864 = vst.msk [vmem:[#allocation2 + $0x8] sm:$0xff] %vm824, %v862
    %866 = vrot.lane.b32.xlu0 %v797, 80
    %v867 = vpop.permute.xlu0 %866
    %869 = vst.msk [vmem:[#allocation2 + $0x8] sm:$0xff] %vm830, %v867
    %871 = vrot.lane.b32.xlu0 %v798, 96
    %v872 = vpop.permute.xlu0 %871
    %874 = vst.msk [vmem:[#allocation2 + $0x8] sm:$0xff] %vm836, %v872
    %876 = vrot.lane.b32.xlu0 %v799, 112
    %v877 = vpop.permute.xlu0 %876
    %879 = vst.msk [vmem:[#allocation2 + $0x8] sm:$0xff] %vm842, %v877
    %v880 = vld [vmem:[#allocation2] sm:$0xff]
    %v881 = vld [vmem:[#allocation2 + $0x8] sm:$0xff]
    %v882 = vpack.c.bf16 %v880, %v880
    %v883 = vpack.c.bf16 %v881, %v881
    %v884 = vld [vmem:[%s3] sm:$0xf]
    %v885 = vld [vmem:[%s3 + $0x4] sm:$0xf]
    %v886 = vld [vmem:[%s3 + $0x8] sm:$0xf]
    %v887 = vld [vmem:[%s3 + $0xc] sm:$0xf]
    %v888 = vld [vmem:[%s3 + $0x10] sm:$0xf]
    %v889 = vld [vmem:[%s3 + $0x14] sm:$0xf]
    %v890 = vld [vmem:[%s3 + $0x18] sm:$0xf]
    %v891 = vld [vmem:[%s3 + $0x1c] sm:$0xf]
    %v892 = vld [vmem:[%s3 + $0x20] sm:$0xf]
    %v893 = vld [vmem:[%s3 + $0x24] sm:$0xf]
    %v894 = vld [vmem:[%s3 + $0x28] sm:$0xf]
    %v895 = vld [vmem:[%s3 + $0x2c] sm:$0xf]
    %v896 = vld [vmem:[%s3 + $0x30] sm:$0xf]
    %v897 = vld [vmem:[%s3 + $0x34] sm:$0xf]
    %v898 = vld [vmem:[%s3 + $0x38] sm:$0xf]
    %v899 = vld [vmem:[%s3 + $0x3c] sm:$0xf]
    %v900 = vld [vmem:[%s3 + $0x40] sm:$0xf]
    %v901 = vld [vmem:[%s3 + $0x44] sm:$0xf]
    %v902 = vld [vmem:[%s3 + $0x48] sm:$0xf]
    %v903 = vld [vmem:[%s3 + $0x4c] sm:$0xf]
    %v904 = vld [vmem:[%s3 + $0x50] sm:$0xf]
    %v905 = vld [vmem:[%s3 + $0x54] sm:$0xf]
    %v906 = vld [vmem:[%s3 + $0x58] sm:$0xf]
    %v907 = vld [vmem:[%s3 + $0x5c] sm:$0xf]
    %v908 = vld [vmem:[%s3 + $0x60] sm:$0xf]
    %v909 = vld [vmem:[%s3 + $0x64] sm:$0xf]
    %v910 = vld [vmem:[%s3 + $0x68] sm:$0xf]
    %v911 = vld [vmem:[%s3 + $0x6c] sm:$0xf]
    %v912 = vld [vmem:[%s3 + $0x70] sm:$0xf]
    %v913 = vld [vmem:[%s3 + $0x74] sm:$0xf]
    %v914 = vld [vmem:[%s3 + $0x78] sm:$0xf]
    %v915 = vld [vmem:[%s3 + $0x7c] sm:$0xf]
    %v916 = vld [vmem:[%s5] sm:$0x1]
    %v918 = vlaneseq
    %v919 = vshrl.u32 %v918, 7
    %v920 = vsub.s32 0, %v919
    %v921 = vrot.slane %v916, %v920
    %v955 = vunpack.c.l.b16 %v884
    %v956 = vunpack.c.l.b16 %v885
    %v957 = vunpack.c.l.b16 %v886
    %v958 = vunpack.c.l.b16 %v887
    %v959 = vunpack.c.l.b16 %v888
    %v960 = vunpack.c.l.b16 %v889
    %v961 = vunpack.c.l.b16 %v890
    %v962 = vunpack.c.l.b16 %v891
    %v963 = vunpack.c.l.b16 %v892
    %v964 = vunpack.c.l.b16 %v893
    %v965 = vunpack.c.l.b16 %v894
    %v966 = vunpack.c.l.b16 %v895
    %v967 = vunpack.c.l.b16 %v896
    %v968 = vunpack.c.l.b16 %v897
    %v969 = vunpack.c.l.b16 %v898
    %v970 = vunpack.c.l.b16 %v899
    %v971 = vunpack.c.l.b16 %v900
    %v972 = vunpack.c.l.b16 %v901
    %v973 = vunpack.c.l.b16 %v902
    %v974 = vunpack.c.l.b16 %v903
    %v975 = vunpack.c.l.b16 %v904
    %v976 = vunpack.c.l.b16 %v905
    %v977 = vunpack.c.l.b16 %v906
    %v978 = vunpack.c.l.b16 %v907
    %v979 = vunpack.c.l.b16 %v908
    %v980 = vunpack.c.l.b16 %v909
    %v981 = vunpack.c.l.b16 %v910
    %v982 = vunpack.c.l.b16 %v911
    %v983 = vunpack.c.l.b16 %v912
    %v984 = vunpack.c.l.b16 %v913
    %v985 = vunpack.c.l.b16 %v914
    %v986 = vunpack.c.l.b16 %v915
    %v987 = vpack.c.b16 %v956, %v955
    %v988 = vpack.c.b16 %v958, %v957
    %v989 = vpack.c.b16 %v960, %v959
    %v990 = vpack.c.b16 %v962, %v961
    %v991 = vpack.c.b16 %v964, %v963
    %v992 = vpack.c.b16 %v966, %v965
    %v993 = vpack.c.b16 %v968, %v967
    %v994 = vpack.c.b16 %v970, %v969
    %v995 = vpack.c.b16 %v972, %v971
    %v996 = vpack.c.b16 %v974, %v973
    %v997 = vpack.c.b16 %v976, %v975
    %v998 = vpack.c.b16 %v978, %v977
    %v999 = vpack.c.b16 %v980, %v979
    %v1000 = vpack.c.b16 %v982, %v981
    %v1001 = vpack.c.b16 %v984, %v983
    %v1002 = vpack.c.b16 %v986, %v985
    %1019 = vmatprep.subr.bf16.mxu0 0
    %1020 = vmatpush1.bf16.msra.mxu0 %v987
    %1021 = vmatprep.subr.bf16.mxu0 0
    %1022 = vmatpush1.bf16.msra.mxu0 %v988
    %1023 = vmatprep.subr.bf16.mxu0 0
    %1024 = vmatpush1.bf16.msra.mxu0 %v989
    %1025 = vmatprep.subr.bf16.mxu0 0
    %1026 = vmatpush1.bf16.msra.mxu0 %v990
    %1027 = vmatprep.subr.bf16.mxu0 0
    %1028 = vmatpush1.bf16.msra.mxu0 %v991
    %1029 = vmatprep.subr.bf16.mxu0 0
    %1030 = vmatpush1.bf16.msra.mxu0 %v992
    %1031 = vmatprep.subr.bf16.mxu0 0
    %1032 = vmatpush1.bf16.msra.mxu0 %v993
    %1033 = vmatprep.subr.bf16.mxu0 0
    %1034 = vmatpush1.bf16.msra.mxu0 %v994
    %1035 = vmatprep.subr.bf16.mxu0 0
    %1036 = vmatpush1.bf16.msra.mxu0 %v995
    %1037 = vmatprep.subr.bf16.mxu0 0
    %1038 = vmatpush1.bf16.msra.mxu0 %v996
    %1039 = vmatprep.subr.bf16.mxu0 0
    %1040 = vmatpush1.bf16.msra.mxu0 %v997
    %1041 = vmatprep.subr.bf16.mxu0 0
    %1042 = vmatpush1.bf16.msra.mxu0 %v998
    %1043 = vmatprep.subr.bf16.mxu0 0
    %1044 = vmatpush1.bf16.msra.mxu0 %v999
    %1045 = vmatprep.subr.bf16.mxu0 0
    %1046 = vmatpush1.bf16.msra.mxu0 %v1000
    %1047 = vmatprep.subr.bf16.mxu0 0
    %1048 = vmatpush1.bf16.msra.mxu0 %v1001
    %1049 = vmatprep.subr.bf16.mxu0 0
    %1050 = vmatpush1.bf16.msra.mxu0 %v1002
    %1051 = vmatprep.mubr.bf16.mxu0 %v883
    %1052 = vmatmul.mubr.bf16.gmra.mrb[0].mxu0 %v882
    %v1053 = vpop.f32.mrb[0].mxu0
    %v1054 = vadd.f32 %v921, %v1053
    %v1055 = vpop.f32.mrb[0].mxu0
    %v1056 = vpop.f32.mrb[0].mxu0
    %v1057 = vpop.f32.mrb[0].mxu0
    %1058 = vdwg.mxu0
    %1059 = vst [vmem:[#allocation3] sm:$0xff] 0.0
    %1060 = vst [vmem:[#allocation3 + $0x8] sm:$0xff] 0.0
    %1061 = vst [vmem:[#allocation3 + $0x10] sm:$0xff] 0.0
    %1062 = vst [vmem:[#allocation3 + $0x18] sm:$0xff] 0.0
    %1063 = vst [vmem:[#allocation3] sm:$0x3] %v1054
    %1064 = vst [vmem:[#allocation3 + $0x6] sm:$0xc] %v1054
    %1065 = vst [vmem:[#allocation3 + $0xc] sm:$0x30] %v1054
    %1066 = vst [vmem:[#allocation3 + $0x12] sm:$0xc0] %v1054
    %v1067 = vld [vmem:[%s4] sm:$0xf]
    %v1068 = vld [vmem:[%s4 + $0x4] sm:$0xf]
    %v1069 = vld [vmem:[%s4 + $0x8] sm:$0xf]
    %v1070 = vld [vmem:[%s4 + $0xc] sm:$0xf]
    %v1071 = vld [vmem:[#allocation3] sm:$0xff]
    %v1076 = vunpack.c.l.b16 %v1067
    %v1077 = vunpack.c.l.b16 %v1068
    %v1078 = vunpack.c.l.b16 %v1069
    %v1079 = vunpack.c.l.b16 %v1070
    %v1080 = vpack.c.b16 %v1077, %v1076
    %v1081 = vpack.c.b16 %v1079, %v1078
    %vm1084 = vcmask 261120
    %v1086 = vsel %vm1084, 0, 0
    %1088 = vmatprep.subr.bf16.mxu0 0
    %1089 = vmatpush1.bf16.msra.mxu0 %v1080
    %1090 = vmatprep.subr.bf16.mxu0 0
    %1091 = vmatpush1.bf16.msra.mxu0 %v1081
    %1092 = vmatprep.subr.bf16.mxu0 0
    %1093 = vmatpush1.bf16.msra.mxu0 0
    %1094 = vmatprep.subr.bf16.mxu0 0
    %1095 = vmatpush1.bf16.msra.mxu0 0
    %1096 = vmatprep.subr.bf16.mxu0 0
    %1097 = vmatpush1.bf16.msra.mxu0 0
    %1098 = vmatprep.subr.bf16.mxu0 0
    %1099 = vmatpush1.bf16.msra.mxu0 0
    %1100 = vmatprep.subr.bf16.mxu0 0
    %1101 = vmatpush1.bf16.msra.mxu0 0
    %1102 = vmatprep.subr.bf16.mxu0 0
    %1103 = vmatpush1.bf16.msra.mxu0 0
    %1104 = vmatprep.subr.bf16.mxu0 0
    %1105 = vmatpush1.bf16.msra.mxu0 0
    %1106 = vmatprep.subr.bf16.mxu0 0
    %1107 = vmatpush1.bf16.msra.mxu0 0
    %1108 = vmatprep.subr.bf16.mxu0 0
    %1109 = vmatpush1.bf16.msra.mxu0 0
    %1110 = vmatprep.subr.bf16.mxu0 0
    %1111 = vmatpush1.bf16.msra.mxu0 0
    %1112 = vmatprep.subr.bf16.mxu0 0
    %1113 = vmatpush1.bf16.msra.mxu0 0
    %1114 = vmatprep.subr.bf16.mxu0 0
    %1115 = vmatpush1.bf16.msra.mxu0 0
    %1116 = vmatprep.subr.bf16.mxu0 0
    %1117 = vmatpush1.bf16.msra.mxu0 0
    %1118 = vmatprep.subr.bf16.mxu0 0
    %1119 = vmatpush1.bf16.msra.mxu0 0
    %1120 = vmatprep.mubr.bf16.mxu0 0
    %1121 = vmatmul.mubr.bf16.gmra.mrb[0].mxu0 %v1086
    %v1122 = vpop.f32.mrb[0].mxu0
    %v1123 = vadd.f32 0.0, %v1122
    %v1124 = vpop.f32.mrb[0].mxu0
    %v1125 = vpop.f32.mrb[0].mxu0
    %v1126 = vpop.f32.mrb[0].mxu0
    %1127 = vdwg.mxu0
    %v1128 = vadd.f32 %v1071, %v1123
    %v1129 = vxor.u32 %v1128, 2147483648
    %v1130 = vmul.f32 %v1129, 1.442695
    %v1131 = vpow.pop %v1130
    %v1132 = vadd.f32 %v1131, 1.0
    %v1133 = vrcp.pop %v1132
    %v1134 = vmul.f32 1.0, %v1133
    %v1135 = vtanh.pop %v1128
    %v1136 = vmul.f32 %v1134, 0.0
    %1138 = vrot.lane.b32.xlu0 %v1135, 32
    %v1139 = vpop.permute.xlu0 %1138
    %v1141 = vmul.f32 %v1134, %v1139
    %1143 = vrot.lane.b32.xlu0 %v1141, 32
    %v1144 = vpop.permute.xlu0 %1143
    %v1146 = vadd.f32 %v1136, %v1144
    %v1147 = vtanh.pop %v1146
    %1149 = vrot.lane.b32.xlu0 %v1147, 32
    %v1150 = vpop.permute.xlu0 %1149
    %v1152 = vmul.f32 %v1134, %v1150
    %v1153 = vpack.c.bf16 %v1152, %v1152
    %v1154 = vld [vmem:[#allocation3 + $0x8] sm:$0xff]
    %1156 = vrot.lane.b32.xlu0 %v1153, 64
    %v1157 = vpop.permute.xlu0 %1156
    %v1159 = vsel %vm1084, %v1157, 0
    %1161 = vmatprep.subr.bf16.mxu0 0
    %1162 = vmatpush1.bf16.msra.mxu0 %v1080
    %1163 = vmatprep.subr.bf16.mxu0 0
    %1164 = vmatpush1.bf16.msra.mxu0 %v1081
    %1165 = vmatprep.subr.bf16.mxu0 0
    %1166 = vmatpush1.bf16.msra.mxu0 0
    %1167 = vmatprep.subr.bf16.mxu0 0
    %1168 = vmatpush1.bf16.msra.mxu0 0
    %1169 = vmatprep.subr.bf16.mxu0 0
    %1170 = vmatpush1.bf16.msra.mxu0 0
    %1171 = vmatprep.subr.bf16.mxu0 0
    %1172 = vmatpush1.bf16.msra.mxu0 0
    %1173 = vmatprep.subr.bf16.mxu0 0
    %1174 = vmatpush1.bf16.msra.mxu0 0
    %1175 = vmatprep.subr.bf16.mxu0 0
    %1176 = vmatpush1.bf16.msra.mxu0 0
    %1177 = vmatprep.subr.bf16.mxu0 0
    %1178 = vmatpush1.bf16.msra.mxu0 0
    %1179 = vmatprep.subr.bf16.mxu0 0
    %1180 = vmatpush1.bf16.msra.mxu0 0
    %1181 = vmatprep.subr.bf16.mxu0 0
    %1182 = vmatpush1.bf16.msra.mxu0 0
    %1183 = vmatprep.subr.bf16.mxu0 0
    %1184 = vmatpush1.bf16.msra.mxu0 0
    %1185 = vmatprep.subr.bf16.mxu0 0
    %1186 = vmatpush1.bf16.msra.mxu0 0
    %1187 = vmatprep.subr.bf16.mxu0 0
    %1188 = vmatpush1.bf16.msra.mxu0 0
    %1189 = vmatprep.subr.bf16.mxu0 0
    %1190 = vmatpush1.bf16.msra.mxu0 0
    %1191 = vmatprep.subr.bf16.mxu0 0
    %1192 = vmatpush1.bf16.msra.mxu0 0
    %1193 = vmatprep.mubr.bf16.mxu0 0
    %1194 = vmatmul.mubr.bf16.gmra.mrb[0].mxu0 %v1159
    %v1195 = vpop.f32.mrb[0].mxu0
    %v1196 = vadd.f32 0.0, %v1195
    %v1197 = vpop.f32.mrb[0].mxu0
    %v1198 = vpop.f32.mrb[0].mxu0
    %v1199 = vpop.f32.mrb[0].mxu0
    %1200 = vdwg.mxu0
    %v1201 = vadd.f32 %v1154, %v1196
    %v1202 = vxor.u32 %v1201, 2147483648
    %v1203 = vmul.f32 %v1202, 1.442695
    %v1204 = vpow.pop %v1203
    %v1205 = vadd.f32 %v1204, 1.0
    %v1206 = vrcp.pop %v1205
    %v1207 = vmul.f32 1.0, %v1206
    %v1208 = vtanh.pop %v1201
    %v1209 = vmul.f32 %v1207, %v1146
    %1211 = vrot.lane.b32.xlu0 %v1208, 32
    %v1212 = vpop.permute.xlu0 %1211
    %v1214 = vmul.f32 %v1207, %v1212
    %1216 = vrot.lane.b32.xlu0 %v1214, 32
    %v1217 = vpop.permute.xlu0 %1216
    %v1219 = vadd.f32 %v1209, %v1217
    %v1220 = vtanh.pop %v1219
    %1222 = vrot.lane.b32.xlu0 %v1220, 32
    %v1223 = vpop.permute.xlu0 %1222
    %v1225 = vmul.f32 %v1207, %v1223
    %v1226 = vpack.c.bf16 %v1225, %v1225
    %v1227 = vld [vmem:[#allocation3 + $0x10] sm:$0xff]
    %1229 = vrot.lane.b32.xlu0 %v1226, 64
    %v1230 = vpop.permute.xlu0 %1229
    %v1232 = vsel %vm1084, %v1230, 0
    %1234 = vmatprep.subr.bf16.mxu0 0
    %1235 = vmatpush1.bf16.msra.mxu0 %v1080
    %1236 = vmatprep.subr.bf16.mxu0 0
    %1237 = vmatpush1.bf16.msra.mxu0 %v1081
    %1238 = vmatprep.subr.bf16.mxu0 0
    %1239 = vmatpush1.bf16.msra.mxu0 0
    %1240 = vmatprep.subr.bf16.mxu0 0
    %1241 = vmatpush1.bf16.msra.mxu0 0
    %1242 = vmatprep.subr.bf16.mxu0 0
    %1243 = vmatpush1.bf16.msra.mxu0 0
    %1244 = vmatprep.subr.bf16.mxu0 0
    %1245 = vmatpush1.bf16.msra.mxu0 0
    %1246 = vmatprep.subr.bf16.mxu0 0
    %1247 = vmatpush1.bf16.msra.mxu0 0
    %1248 = vmatprep.subr.bf16.mxu0 0
    %1249 = vmatpush1.bf16.msra.mxu0 0
    %1250 = vmatprep.subr.bf16.mxu0 0
    %1251 = vmatpush1.bf16.msra.mxu0 0
    %1252 = vmatprep.subr.bf16.mxu0 0
    %1253 = vmatpush1.bf16.msra.mxu0 0
    %1254 = vmatprep.subr.bf16.mxu0 0
    %1255 = vmatpush1.bf16.msra.mxu0 0
    %1256 = vmatprep.subr.bf16.mxu0 0
    %1257 = vmatpush1.bf16.msra.mxu0 0
    %1258 = vmatprep.subr.bf16.mxu0 0
    %1259 = vmatpush1.bf16.msra.mxu0 0
    %1260 = vmatprep.subr.bf16.mxu0 0
    %1261 = vmatpush1.bf16.msra.mxu0 0
    %1262 = vmatprep.subr.bf16.mxu0 0
    %1263 = vmatpush1.bf16.msra.mxu0 0
    %1264 = vmatprep.subr.bf16.mxu0 0
    %1265 = vmatpush1.bf16.msra.mxu0 0
    %1266 = vmatprep.mubr.bf16.mxu0 0
    %1267 = vmatmul.mubr.bf16.gmra.mrb[0].mxu0 %v1232
    %v1268 = vpop.f32.mrb[0].mxu0
    %v1269 = vadd.f32 0.0, %v1268
    %v1270 = vpop.f32.mrb[0].mxu0
    %v1271 = vpop.f32.mrb[0].mxu0
    %v1272 = vpop.f32.mrb[0].mxu0
    %1273 = vdwg.mxu0
    %v1274 = vadd.f32 %v1227, %v1269
    %v1275 = vxor.u32 %v1274, 2147483648
    %v1276 = vmul.f32 %v1275, 1.442695
    %v1277 = vpow.pop %v1276
    %v1278 = vadd.f32 %v1277, 1.0
    %v1279 = vrcp.pop %v1278
    %v1280 = vmul.f32 1.0, %v1279
    %v1281 = vtanh.pop %v1274
    %v1282 = vmul.f32 %v1280, %v1219
    %1284 = vrot.lane.b32.xlu0 %v1281, 32
    %v1285 = vpop.permute.xlu0 %1284
    %v1287 = vmul.f32 %v1280, %v1285
    %1289 = vrot.lane.b32.xlu0 %v1287, 32
    %v1290 = vpop.permute.xlu0 %1289
    %v1292 = vadd.f32 %v1282, %v1290
    %v1293 = vtanh.pop %v1292
    %1295 = vrot.lane.b32.xlu0 %v1293, 32
    %v1296 = vpop.permute.xlu0 %1295
    %v1298 = vmul.f32 %v1280, %v1296
    %v1299 = vpack.c.bf16 %v1298, %v1298
    %v1300 = vld [vmem:[#allocation3 + $0x18] sm:$0xff]
    %1302 = vrot.lane.b32.xlu0 %v1299, 64
    %v1303 = vpop.permute.xlu0 %1302
    %v1305 = vsel %vm1084, %v1303, 0
    %1307 = vmatprep.subr.bf16.mxu0 0
    %1308 = vmatpush1.bf16.msra.mxu0 %v1080
    %1309 = vmatprep.subr.bf16.mxu0 0
    %1310 = vmatpush1.bf16.msra.mxu0 %v1081
    %1311 = vmatprep.subr.bf16.mxu0 0
    %1312 = vmatpush1.bf16.msra.mxu0 0
    %1313 = vmatprep.subr.bf16.mxu0 0
    %1314 = vmatpush1.bf16.msra.mxu0 0
    %1315 = vmatprep.subr.bf16.mxu0 0
    %1316 = vmatpush1.bf16.msra.mxu0 0
    %1317 = vmatprep.subr.bf16.mxu0 0
    %1318 = vmatpush1.bf16.msra.mxu0 0
    %1319 = vmatprep.subr.bf16.mxu0 0
    %1320 = vmatpush1.bf16.msra.mxu0 0
    %1321 = vmatprep.subr.bf16.mxu0 0
    %1322 = vmatpush1.bf16.msra.mxu0 0
    %1323 = vmatprep.subr.bf16.mxu0 0
    %1324 = vmatpush1.bf16.msra.mxu0 0
    %1325 = vmatprep.subr.bf16.mxu0 0
    %1326 = vmatpush1.bf16.msra.mxu0 0
    %1327 = vmatprep.subr.bf16.mxu0 0
    %1328 = vmatpush1.bf16.msra.mxu0 0
    %1329 = vmatprep.subr.bf16.mxu0 0
    %1330 = vmatpush1.bf16.msra.mxu0 0
    %1331 = vmatprep.subr.bf16.mxu0 0
    %1332 = vmatpush1.bf16.msra.mxu0 0
    %1333 = vmatprep.subr.bf16.mxu0 0
    %1334 = vmatpush1.bf16.msra.mxu0 0
    %1335 = vmatprep.subr.bf16.mxu0 0
    %1336 = vmatpush1.bf16.msra.mxu0 0
    %1337 = vmatprep.subr.bf16.mxu0 0
    %1338 = vmatpush1.bf16.msra.mxu0 0
    %1339 = vmatprep.mubr.bf16.mxu0 0
    %1340 = vmatmul.mubr.bf16.gmra.mrb[0].mxu0 %v1305
    %v1341 = vpop.f32.mrb[0].mxu0
    %v1342 = vadd.f32 0.0, %v1341
    %v1343 = vpop.f32.mrb[0].mxu0
    %v1344 = vpop.f32.mrb[0].mxu0
    %v1345 = vpop.f32.mrb[0].mxu0
    %1346 = vdwg.mxu0
    %v1347 = vadd.f32 %v1300, %v1342
    %v1348 = vxor.u32 %v1347, 2147483648
    %v1349 = vmul.f32 %v1348, 1.442695
    %v1350 = vpow.pop %v1349
    %v1351 = vadd.f32 %v1350, 1.0
    %v1352 = vrcp.pop %v1351
    %v1353 = vmul.f32 1.0, %v1352
    %v1354 = vtanh.pop %v1347
    %v1355 = vmul.f32 %v1353, %v1292
    %1357 = vrot.lane.b32.xlu0 %v1354, 32
    %v1358 = vpop.permute.xlu0 %1357
    %v1360 = vmul.f32 %v1353, %v1358
    %1362 = vrot.lane.b32.xlu0 %v1360, 32
    %v1363 = vpop.permute.xlu0 %1362
    %v1365 = vadd.f32 %v1355, %v1363
    %v1366 = vtanh.pop %v1365
    %1368 = vrot.lane.b32.xlu0 %v1366, 32
    %v1369 = vpop.permute.xlu0 %1368
    %v1371 = vmul.f32 %v1353, %v1369
    %v1372 = vld [vmem:[%s6] sm:$0xff]
    %v1373 = vld [vmem:[%s6 + $0x8] sm:$0xff]
    %v1374 = vld [vmem:[%s6 + $0x10] sm:$0xff]
    %v1375 = vld [vmem:[%s6 + $0x18] sm:$0xff]
    %v1376 = vld [vmem:[%s7] sm:$0x1]
    %v1378 = vlaneseq
    %v1379 = vshrl.u32 %v1378, 7
    %v1380 = vsub.s32 0, %v1379
    %v1381 = vrot.slane %v1376, %v1380
    %1384 = vrot.lane.b32.xlu0 %v1371, 64
    %v1385 = vpop.permute.xlu0 %1384
    %v1386 = vsel %vm1084, %v1385, 0
    %1388 = vmatprep.subr.mxu0 0.0
    %1389 = vmatpush1.msra.mxu0 %v1372
    %1390 = vmatprep.subr.mxu0 0.0
    %1391 = vmatpush1.msra.mxu0 %v1373
    %1392 = vmatprep.subr.mxu0 0.0
    %1393 = vmatpush1.msra.mxu0 %v1374
    %1394 = vmatprep.subr.mxu0 0.0
    %1395 = vmatpush1.msra.mxu0 %v1375
    %1396 = vmatprep.subr.mxu0 0.0
    %1397 = vmatpush1.msra.mxu0 0.0
    %1398 = vmatprep.subr.mxu0 0.0
    %1399 = vmatpush1.msra.mxu0 0.0
    %1400 = vmatprep.subr.mxu0 0.0
    %1401 = vmatpush1.msra.mxu0 0.0
    %1402 = vmatprep.subr.mxu0 0.0
    %1403 = vmatpush1.msra.mxu0 0.0
    %1404 = vmatprep.subr.mxu0 0.0
    %1405 = vmatpush1.msra.mxu0 0.0
    %1406 = vmatprep.subr.mxu0 0.0
    %1407 = vmatpush1.msra.mxu0 0.0
    %1408 = vmatprep.subr.mxu0 0.0
    %1409 = vmatpush1.msra.mxu0 0.0
    %1410 = vmatprep.subr.mxu0 0.0
    %1411 = vmatpush1.msra.mxu0 0.0
    %1412 = vmatprep.subr.mxu0 0.0
    %1413 = vmatpush1.msra.mxu0 0.0
    %1414 = vmatprep.subr.mxu0 0.0
    %1415 = vmatpush1.msra.mxu0 0.0
    %1416 = vmatprep.subr.mxu0 0.0
    %1417 = vmatpush1.msra.mxu0 0.0
    %1418 = vmatprep.subr.mxu0 0.0
    %1419 = vmatpush1.msra.mxu0 0.0
    %1420 = vmatprep.subr.mxu0 0.0
    %1421 = vmatpush1.msra.mxu0 0.0
    %1422 = vmatprep.subr.mxu0 0.0
    %1423 = vmatpush1.msra.mxu0 0.0
    %1424 = vmatprep.subr.mxu0 0.0
    %1425 = vmatpush1.msra.mxu0 0.0
    %1426 = vmatprep.subr.mxu0 0.0
    %1427 = vmatpush1.msra.mxu0 0.0
    %1428 = vmatprep.subr.mxu0 0.0
    %1429 = vmatpush1.msra.mxu0 0.0
    %1430 = vmatprep.subr.mxu0 0.0
    %1431 = vmatpush1.msra.mxu0 0.0
    %1432 = vmatprep.subr.mxu0 0.0
    %1433 = vmatpush1.msra.mxu0 0.0
    %1434 = vmatprep.subr.mxu0 0.0
    %1435 = vmatpush1.msra.mxu0 0.0
    %1436 = vmatprep.subr.mxu0 0.0
    %1437 = vmatpush1.msra.mxu0 0.0
    %1438 = vmatprep.subr.mxu0 0.0
    %1439 = vmatpush1.msra.mxu0 0.0
    %1440 = vmatprep.subr.mxu0 0.0
    %1441 = vmatpush1.msra.mxu0 0.0
    %1442 = vmatprep.subr.mxu0 0.0
    %1443 = vmatpush1.msra.mxu0 0.0
    %1444 = vmatprep.subr.mxu0 0.0
    %1445 = vmatpush1.msra.mxu0 0.0
    %1446 = vmatprep.subr.mxu0 0.0
    %1447 = vmatpush1.msra.mxu0 0.0
    %1448 = vmatprep.subr.mxu0 0.0
    %1449 = vmatpush1.msra.mxu0 0.0
    %1450 = vmatprep.subr.mxu0 0.0
    %1451 = vmatpush1.msra.mxu0 0.0
    %1452 = vmatprep.mubr.f32.mxu0 0.0
    %1453 = vmatmul.mubr.f32.gmra.mrb[0].mxu0 %v1386
    %v1454 = vpop.f32.mrb[0].mxu0
    %v1455 = vadd.f32 %v1381, %v1454
    %v1456 = vpop.f32.mrb[0].mxu0
    %1457 = vdwg.mxu0
    %vm1458 = vcmask 9216
    %1459 = vst.msk [vmem:[#allocation4] sm:$0x3] %vm1458, %v1455
    // Predicated region
    $region34: #{mri_sequence_net_forward.3} parent=1 // pred_check
      _
    $region35: #{mri_sequence_net_forward.3} parent=1 // pred_check_branch
      %1461 = sbr.rel (0) target = $region37
    $region36: #{mri_sequence_net_forward.3} parent=1 // pred_region
      %s1463 = ssub.s32 32, 32
      %1464 = vsyncadd [#allocation5], %s1463
      %s1466 = sshll.u32 [#allocation4], 4
      %s1467 = int_to_ptr.vmem [resolvable:$true] %s1466
      %1469 = dma.vmem_to_hbm [thread:$0]  %s1467, 32, %s8, [#allocation5]
    $region37: #{mri_sequence_net_forward.3} parent=1 // pred_fallthru
      _
    // Predicated region
    $region38: #{mri_sequence_net_forward.3} parent=1 // pred_check
      _
    $region39: #{mri_sequence_net_forward.3} parent=1 // pred_check_branch
      %1471 = sbr.rel (0) target = $region41
    $region40: #{mri_sequence_net_forward.3} parent=1 // pred_region
      %1472 = dma.done [#allocation5], 32
    $region41: #{mri_sequence_net_forward.3} parent=1 // pred_fallthru
      _
    %1473 = vsyncpa [#allocation5], 1

</llo_original>
